<compile_context>
chip_gen: v7x
topology: tpu7x:2x2x1
jax: 0.10.0
libtpu: 0.0.40
codegen_flags: <defaults>
</compile_context>

<pallas_src>
import jax
import jax.numpy as jnp
from jax import lax
from jax.experimental import pallas as pl
from jax.experimental.pallas import tpu as pltpu

EPS = 1e-5
NEG_SLOPE = 0.2


def _r8(r):
    return -(-r // 8) * 8


class _Layout:
    """Static shape / consts-table row-offset bookkeeping shared by the wrapper
    (table construction) and the kernel factory (table slicing)."""

    def __init__(self, N, CIN, C1, C2, H, W):
        self.N, self.CIN, self.C1, self.C2, self.H, self.W = N, CIN, C1, C2, H, W
        self.HP, self.WP = H + 2, W + 2
        self.PP = self.HP * self.WP          # padded flat spatial length (lanes)
        self.SH = self.WP + 1                # side halo so every 3x3 tap is a lane slice
        self.L1 = self.PP + 2 * self.SH
        self.TB1 = _r8(C1)                   # 8-aligned sublane stride of a conv1 tap block
        self.TB2 = _r8(C2)
        # consts-table row offsets (all blocks 8-row aligned)
        self.W1 = 0
        self.W2 = self.W1 + CIN * 9 * self.TB1
        self.G1 = self.W2 + C1 * 9 * self.TB2
        self.B1 = self.G1 + self.TB1
        self.G2 = self.B1 + self.TB1
        self.B2 = self.G2 + self.TB2
        self.WL = self.B2 + self.TB2
        self.BIAS = self.WL + self.TB2
        self.TAB_ROWS = self.BIAS + 8
        self.inv_cnt = 1.0 / float(N * H * W)


def _make_kernel(L):
    N, CIN, C1, C2 = L.N, L.CIN, L.C1, L.C2
    PP, SH, WP, L1 = L.PP, L.SH, L.WP, L.L1
    TB1, TB2 = L.TB1, L.TB2
    f32 = jnp.float32

    def kernel(x_ref, tab_ref, out_ref, h1_ref):

        def conv(src_ref, src_row, w_off, tb, cout, cin):
            # Packed 3x3 / stride 1 / pad 1 conv: one (cout, PP) accumulator per
            # batch element (output channels on sublanes).  Taps are (1, PP)
            # lane-shifted static slices of a VMEM ref; the weight of a tap is a
            # pre-broadcast, mask-folded (cout, PP) row block of the consts
            # table, so each tap is one broadcast-FMA and the accumulator's halo
            # lanes stay exactly zero.
            acc = [jnp.zeros((cout, PP), f32) for _ in range(N)]
            for ci in range(cin):
                for dy in range(3):
                    for dx in range(3):
                        t = (ci * 3 + dy) * 3 + dx
                        w = tab_ref[w_off + t * tb:w_off + t * tb + cout, :]
                        start = SH + (dy - 1) * WP + (dx - 1)
                        for n in range(N):
                            r = src_row(ci, n)
                            tap = src_ref[r:r + 1, start:start + PP]   # (1, PP)
                            acc[n] = acc[n] + tap * w                  # broadcast FMA
            return acc

        def bn_affine(acc, g_off, b_off, cout):
            # Train-mode BatchNorm folded to per-channel scale/shift rows.  The
            # accumulator halos are exactly zero (mask folded into the conv
            # weights), so plain lane reductions give interior-only statistics
            # (count = N*H*W).  gamma/beta rows are mask-folded too, so the
            # affine output also has an exactly-zero halo.
            s, sq = acc[0], acc[0] * acc[0]
            for n in range(1, N):
                s = s + acc[n]
                sq = sq + acc[n] * acc[n]
            s = jnp.sum(s, axis=1, keepdims=True)            # (cout, 1)
            sq = jnp.sum(sq, axis=1, keepdims=True)          # (cout, 1)
            mu = s * L.inv_cnt
            var = sq * L.inv_cnt - mu * mu                   # biased, one-pass
            g = tab_ref[g_off:g_off + cout, :]               # (cout, PP) masked gamma
            b = tab_ref[b_off:b_off + cout, :]               # (cout, PP) masked beta
            scale = lax.rsqrt(var + EPS) * g                 # (cout, PP)
            shift = b - mu * scale                           # (cout, PP)
            return scale, shift

        def lrelu(z):
            return jnp.where(z >= 0, z, NEG_SLOPE * z)

        # ---- conv1 + BN1 + LeakyReLU -> staging (zero-padded like an image) ----
        acc1 = conv(x_ref, lambda ci, n: ci * N + n, L.W1, TB1, C1, CIN)
        scale1, shift1 = bn_affine(acc1, L.G1, L.B1, C1)
        # zero the staging lane-halos once; interiors are written below
        h1_ref[:, 0:SH] = jnp.zeros((N * C1, SH), f32)
        h1_ref[:, SH + PP:L1] = jnp.zeros((N * C1, L1 - SH - PP), f32)
        for n in range(N):
            h1 = lrelu(acc1[n] * scale1 + shift1)            # (C1, PP), zero halo
            h1_ref[n * C1:(n + 1) * C1, SH:SH + PP] = h1     # one store per batch

        # ---- conv2 + BN2 + LeakyReLU ----
        acc2 = conv(h1_ref, lambda ci, n: n * C1 + ci, L.W2, TB2, C2, C1)
        scale2, shift2 = bn_affine(acc2, L.G2, L.B2, C2)

        # ---- linear1 (+ bias) + Sigmoid ----
        wl = tab_ref[L.WL:L.WL + C2, :]                      # zero-halo linear weight rows
        bias = tab_ref[L.BIAS:L.BIAS + 1, 0:1]               # (1, 1)
        for n in range(N):
            h2 = lrelu(acc2[n] * scale2 + shift2)            # (C2, PP)
            p = h2 * wl                                      # halo killed by wl zeros
            logit = jnp.sum(jnp.sum(p, axis=1, keepdims=True),
                            axis=0, keepdims=True) + bias    # (1, 1)
            out_ref[n:n + 1, :] = pl.reciprocal(1.0 + jnp.exp(-logit), approx=True)

    return kernel


def _build_consts_table(params, L):
    """Single lane-dense (TAB_ROWS, PP) f32 operand holding every parameter,
    pre-broadcast per output-channel row with the interior mask folded in."""
    mask = (jnp.zeros((L.HP, L.WP), jnp.float32)
            .at[1:L.H + 1, 1:L.W + 1].set(1.0).reshape(L.PP))

    def conv_tab(w_oihw, cout, cin, tb):
        # tap t = (ci*3+dy)*3+dx -> 8-aligned block; row co, lane p:
        #   w[co, ci, dy, dx] * interior_mask[p]
        w = jnp.transpose(w_oihw.astype(jnp.float32), (1, 2, 3, 0)).reshape(cin * 9, cout)
        blk = w[:, :, None] * mask[None, None, :]
        blk = jnp.pad(blk, ((0, 0), (0, tb - cout), (0, 0)))
        return blk.reshape(cin * 9 * tb, L.PP)

    def chan_tab(v, tb):
        b = v.astype(jnp.float32)[:, None] * mask[None, :]
        return jnp.pad(b, ((0, tb - v.shape[0]), (0, 0)))

    wl = params["lin_w"].astype(jnp.float32).reshape(L.C2, L.H, L.W)
    wl = jnp.pad(wl, ((0, 0), (1, 1), (1, 1))).reshape(L.C2, L.PP)   # zero halo
    wl = jnp.pad(wl, ((0, L.TB2 - L.C2), (0, 0)))
    bias = jnp.full((1, L.PP), params["lin_b"].astype(jnp.float32)[0])
    bias = jnp.pad(bias, ((0, 7), (0, 0)))

    tab = jnp.concatenate([
        conv_tab(params["conv1_w"], L.C1, L.CIN, L.TB1),
        conv_tab(params["conv2_w"], L.C2, L.C1, L.TB2),
        chan_tab(params["bn1_gamma"], L.TB1),
        chan_tab(params["bn1_beta"], L.TB1),
        chan_tab(params["bn2_gamma"], L.TB2),
        chan_tab(params["bn2_beta"], L.TB2),
        wl,
        bias,
    ], axis=0)
    assert tab.shape == (L.TAB_ROWS, L.PP), tab.shape
    return tab


def discriminator_forward(x, y, params, *, packnum=1, pixels_edge=5):
    """Pallas forward.  x: (N, packnum*num_pixels).  y (condition) is ignored
    because the reference module hard-codes self.num_condition = 0.  BatchNorm
    uses training-mode batch statistics (biased variance, eps=1e-5)."""
    del y
    N = x.shape[0]
    H = W = pixels_edge
    w1 = params["conv1_w"]                       # (C1, CIN, 3, 3) torch OIHW
    w2 = params["conv2_w"]                       # (C2, C1, 3, 3)
    C1, CIN = w1.shape[0], w1.shape[1]
    C2 = w2.shape[0]
    L = _Layout(N, CIN, C1, C2, H, W)
    kernel = _make_kernel(L)

    # ---- lane-dense layout glue (plain XLA, outside the kernel) ----
    # x -> (CIN*N, L1): per (ci, n) the zero-padded image flattened row-major,
    # with an SH-wide zero halo at both ends of the lane axis.
    x_img = x.reshape(N, CIN, H, W).astype(jnp.float32)          # torch reshape
    x_pad = jnp.pad(x_img, ((0, 0), (0, 0), (1, 1), (1, 1)))     # (N, CIN, HP, WP)
    x_flat = jnp.transpose(x_pad, (1, 0, 2, 3)).reshape(CIN * N, L.PP)
    x_flat = jnp.pad(x_flat, ((0, 0), (L.SH, L.SH)))             # (CIN*N, L1)

    tab = _build_consts_table(params, L)                         # single consts operand

    out = pl.pallas_call(
        kernel,
        out_shape=jax.ShapeDtypeStruct((N, 1), jnp.float32),
        in_specs=[pl.BlockSpec(memory_space=pltpu.MemorySpace.VMEM),
                  pl.BlockSpec(memory_space=pltpu.MemorySpace.VMEM)],
        out_specs=pl.BlockSpec(memory_space=pltpu.MemorySpace.VMEM),
        scratch_shapes=[pltpu.VMEM((N * C1, L.L1), jnp.float32)],
    )(x_flat, tab)
    return out
    # TODO(synk): Minibatch-discrimination branch (Minibatch=True) and the GDPP
    # (x, x1) dual return are not implemented; this config disables both.


def discriminator_forward_ref(x, y, params, *, packnum=1, pixels_edge=5):
    """Pure-JAX NCHW reference matching the torch forward (train-mode BN)."""
    del y
    N = x.shape[0]
    H = W = pixels_edge
    h = x.reshape(N, packnum, H, W).astype(jnp.float32)

    def conv_bn_lrelu(h, w_oihw, gamma, beta):
        h = lax.conv_general_dilated(h, w_oihw, (1, 1), ((1, 1), (1, 1)),
                                     dimension_numbers=("NCHW", "OIHW", "NCHW"))
        mu = jnp.mean(h, axis=(0, 2, 3), keepdims=True)
        var = jnp.mean((h - mu) ** 2, axis=(0, 2, 3), keepdims=True)
        h = gamma.reshape(1, -1, 1, 1) * (h - mu) / jnp.sqrt(var + EPS) + beta.reshape(1, -1, 1, 1)
        return jnp.where(h >= 0, h, NEG_SLOPE * h)

    h = conv_bn_lrelu(h, params["conv1_w"], params["bn1_gamma"], params["bn1_beta"])
    h = conv_bn_lrelu(h, params["conv2_w"], params["bn2_gamma"], params["bn2_beta"])
    x1 = h.reshape(N, -1)
    logits = x1 @ params["lin_w"].T + params["lin_b"]
    return jax.nn.sigmoid(logits)


if __name__ == "__main__":
    # DiscriminatorNet(channels=32, z_dim=?, num_condition=0, num_pixels=25,
    #                  Minibatch=False, PacGAN_pacnum=1, mode_collapse='none', gen_num=0)
    channels = 32
    num_pixels = 25          # pixels_edge = 5 == init_pixel -> linear1 shapes consistent
    pixels_edge = 5
    packnum = 1
    N = 2
    CIN = packnum
    C1 = channels // 8       # 4
    C2 = channels // 4       # 8
    n_out = 1                # gen_num == 0 -> Sigmoid

    key = jax.random.PRNGKey(0)
    ks = jax.random.split(key, 9)
    params = {
        "conv1_w": 0.2 * jax.random.normal(ks[0], (C1, CIN, 3, 3), jnp.float32),
        "bn1_gamma": 1.0 + 0.1 * jax.random.normal(ks[1], (C1,), jnp.float32),
        "bn1_beta": 0.1 * jax.random.normal(ks[2], (C1,), jnp.float32),
        "conv2_w": 0.2 * jax.random.normal(ks[3], (C2, C1, 3, 3), jnp.float32),
        "bn2_gamma": 1.0 + 0.1 * jax.random.normal(ks[4], (C2,), jnp.float32),
        "bn2_beta": 0.1 * jax.random.normal(ks[5], (C2,), jnp.float32),
        "lin_w": 0.1 * jax.random.normal(ks[6], (n_out, C2 * pixels_edge * pixels_edge), jnp.float32),
        "lin_b": 0.05 * jax.random.normal(ks[7], (n_out,), jnp.float32),
    }
    x = jax.random.normal(ks[8], (N, packnum * num_pixels), jnp.float32)
    y = jnp.zeros((N, 3), jnp.float32)   # condition input; ignored (num_condition == 0)

    out = discriminator_forward(x, y, params, packnum=packnum, pixels_edge=pixels_edge)
    out = jax.block_until_ready(out)

    ref = discriminator_forward_ref(x, y, params, packnum=packnum, pixels_edge=pixels_edge)
    assert out.shape == (N, 1), out.shape
    # Tolerance accounts for the approximate EUP reciprocal in the final sigmoid;
    # the conv/BN/linear pipeline itself is exact f32.
    assert jnp.allclose(out, ref, atol=5e-3, rtol=5e-3), (out, ref)
    print("KERNEL_OK")
</pallas_src>

<mosaic_0001>
module attributes {stable_mosaic.version = 11 : i64} {
  func.func @kernel(%arg0: memref<2x65xf32, #tpu.memory_space<vmem>>, %arg1: memref<408x49xf32, #tpu.memory_space<vmem>>, %arg2: memref<2x1xf32, #tpu.memory_space<vmem>>, %arg3: memref<8x65xf32, #tpu.memory_space<vmem>>) attributes {dimension_semantics = [], scalar_prefetch = 0 : i64, scratch_operands = 1 : i64, tpu.core_type = #tpu.core_type<tc>} {
    %cst = arith.constant 0.000000e+00 : f32
    %0 = vector.broadcast %cst : f32 to vector<4x49xf32>
    %cst_0 = arith.constant 0.000000e+00 : f32
    %1 = vector.broadcast %cst_0 : f32 to vector<4x49xf32>
    %c0 = arith.constant 0 : index
    %c0_1 = arith.constant 0 : index
    %2 = vector.load %arg1[%c0, %c0_1] : memref<408x49xf32, #tpu.memory_space<vmem>>, vector<4x49xf32>
    %c0_2 = arith.constant 0 : index
    %c0_3 = arith.constant 0 : index
    %3 = vector.load %arg0[%c0_2, %c0_3] : memref<2x65xf32, #tpu.memory_space<vmem>>, vector<1x49xf32>
    %4 = vector.broadcast %3 : vector<1x49xf32> to vector<4x49xf32>
    %5 = arith.mulf %4, %2 : vector<4x49xf32>
    %6 = arith.addf %0, %5 : vector<4x49xf32>
    %c1 = arith.constant 1 : index
    %c0_4 = arith.constant 0 : index
    %7 = vector.load %arg0[%c1, %c0_4] : memref<2x65xf32, #tpu.memory_space<vmem>>, vector<1x49xf32>
    %8 = vector.broadcast %7 : vector<1x49xf32> to vector<4x49xf32>
    %9 = arith.mulf %8, %2 : vector<4x49xf32>
    %10 = arith.addf %1, %9 : vector<4x49xf32>
    %c8 = arith.constant 8 : index
    %c0_5 = arith.constant 0 : index
    %11 = vector.load %arg1[%c8, %c0_5] : memref<408x49xf32, #tpu.memory_space<vmem>>, vector<4x49xf32>
    %c0_6 = arith.constant 0 : index
    %c1_7 = arith.constant 1 : index
    %12 = vector.load %arg0[%c0_6, %c1_7] : memref<2x65xf32, #tpu.memory_space<vmem>>, vector<1x49xf32>
    %13 = vector.broadcast %12 : vector<1x49xf32> to vector<4x49xf32>
    %14 = arith.mulf %13, %11 : vector<4x49xf32>
    %15 = arith.addf %6, %14 : vector<4x49xf32>
    %c1_8 = arith.constant 1 : index
    %c1_9 = arith.constant 1 : index
    %16 = vector.load %arg0[%c1_8, %c1_9] : memref<2x65xf32, #tpu.memory_space<vmem>>, vector<1x49xf32>
    %17 = vector.broadcast %16 : vector<1x49xf32> to vector<4x49xf32>
    %18 = arith.mulf %17, %11 : vector<4x49xf32>
    %19 = arith.addf %10, %18 : vector<4x49xf32>
    %c16 = arith.constant 16 : index
    %c0_10 = arith.constant 0 : index
    %20 = vector.load %arg1[%c16, %c0_10] : memref<408x49xf32, #tpu.memory_space<vmem>>, vector<4x49xf32>
    %c0_11 = arith.constant 0 : index
    %c2 = arith.constant 2 : index
    %21 = vector.load %arg0[%c0_11, %c2] : memref<2x65xf32, #tpu.memory_space<vmem>>, vector<1x49xf32>
    %22 = vector.broadcast %21 : vector<1x49xf32> to vector<4x49xf32>
    %23 = arith.mulf %22, %20 : vector<4x49xf32>
    %24 = arith.addf %15, %23 : vector<4x49xf32>
    %c1_12 = arith.constant 1 : index
    %c2_13 = arith.constant 2 : index
    %25 = vector.load %arg0[%c1_12, %c2_13] : memref<2x65xf32, #tpu.memory_space<vmem>>, vector<1x49xf32>
    %26 = vector.broadcast %25 : vector<1x49xf32> to vector<4x49xf32>
    %27 = arith.mulf %26, %20 : vector<4x49xf32>
    %28 = arith.addf %19, %27 : vector<4x49xf32>
    %c24 = arith.constant 24 : index
    %c0_14 = arith.constant 0 : index
    %29 = vector.load %arg1[%c24, %c0_14] : memref<408x49xf32, #tpu.memory_space<vmem>>, vector<4x49xf32>
    %c0_15 = arith.constant 0 : index
    %c7 = arith.constant 7 : index
    %30 = vector.load %arg0[%c0_15, %c7] : memref<2x65xf32, #tpu.memory_space<vmem>>, vector<1x49xf32>
    %31 = vector.broadcast %30 : vector<1x49xf32> to vector<4x49xf32>
    %32 = arith.mulf %31, %29 : vector<4x49xf32>
    %33 = arith.addf %24, %32 : vector<4x49xf32>
    %c1_16 = arith.constant 1 : index
    %c7_17 = arith.constant 7 : index
    %34 = vector.load %arg0[%c1_16, %c7_17] : memref<2x65xf32, #tpu.memory_space<vmem>>, vector<1x49xf32>
    %35 = vector.broadcast %34 : vector<1x49xf32> to vector<4x49xf32>
    %36 = arith.mulf %35, %29 : vector<4x49xf32>
    %37 = arith.addf %28, %36 : vector<4x49xf32>
    %c32 = arith.constant 32 : index
    %c0_18 = arith.constant 0 : index
    %38 = vector.load %arg1[%c32, %c0_18] : memref<408x49xf32, #tpu.memory_space<vmem>>, vector<4x49xf32>
    %c0_19 = arith.constant 0 : index
    %c8_20 = arith.constant 8 : index
    %39 = vector.load %arg0[%c0_19, %c8_20] : memref<2x65xf32, #tpu.memory_space<vmem>>, vector<1x49xf32>
    %40 = vector.broadcast %39 : vector<1x49xf32> to vector<4x49xf32>
    %41 = arith.mulf %40, %38 : vector<4x49xf32>
    %42 = arith.addf %33, %41 : vector<4x49xf32>
    %c1_21 = arith.constant 1 : index
    %c8_22 = arith.constant 8 : index
    %43 = vector.load %arg0[%c1_21, %c8_22] : memref<2x65xf32, #tpu.memory_space<vmem>>, vector<1x49xf32>
    %44 = vector.broadcast %43 : vector<1x49xf32> to vector<4x49xf32>
    %45 = arith.mulf %44, %38 : vector<4x49xf32>
    %46 = arith.addf %37, %45 : vector<4x49xf32>
    %c40 = arith.constant 40 : index
    %c0_23 = arith.constant 0 : index
    %47 = vector.load %arg1[%c40, %c0_23] : memref<408x49xf32, #tpu.memory_space<vmem>>, vector<4x49xf32>
    %c0_24 = arith.constant 0 : index
    %c9 = arith.constant 9 : index
    %48 = vector.load %arg0[%c0_24, %c9] : memref<2x65xf32, #tpu.memory_space<vmem>>, vector<1x49xf32>
    %49 = vector.broadcast %48 : vector<1x49xf32> to vector<4x49xf32>
    %50 = arith.mulf %49, %47 : vector<4x49xf32>
    %51 = arith.addf %42, %50 : vector<4x49xf32>
    %c1_25 = arith.constant 1 : index
    %c9_26 = arith.constant 9 : index
    %52 = vector.load %arg0[%c1_25, %c9_26] : memref<2x65xf32, #tpu.memory_space<vmem>>, vector<1x49xf32>
    %53 = vector.broadcast %52 : vector<1x49xf32> to vector<4x49xf32>
    %54 = arith.mulf %53, %47 : vector<4x49xf32>
    %55 = arith.addf %46, %54 : vector<4x49xf32>
    %c48 = arith.constant 48 : index
    %c0_27 = arith.constant 0 : index
    %56 = vector.load %arg1[%c48, %c0_27] : memref<408x49xf32, #tpu.memory_space<vmem>>, vector<4x49xf32>
    %c0_28 = arith.constant 0 : index
    %c14 = arith.constant 14 : index
    %57 = vector.load %arg0[%c0_28, %c14] : memref<2x65xf32, #tpu.memory_space<vmem>>, vector<1x49xf32>
    %58 = vector.broadcast %57 : vector<1x49xf32> to vector<4x49xf32>
    %59 = arith.mulf %58, %56 : vector<4x49xf32>
    %60 = arith.addf %51, %59 : vector<4x49xf32>
    %c1_29 = arith.constant 1 : index
    %c14_30 = arith.constant 14 : index
    %61 = vector.load %arg0[%c1_29, %c14_30] : memref<2x65xf32, #tpu.memory_space<vmem>>, vector<1x49xf32>
    %62 = vector.broadcast %61 : vector<1x49xf32> to vector<4x49xf32>
    %63 = arith.mulf %62, %56 : vector<4x49xf32>
    %64 = arith.addf %55, %63 : vector<4x49xf32>
    %c56 = arith.constant 56 : index
    %c0_31 = arith.constant 0 : index
    %65 = vector.load %arg1[%c56, %c0_31] : memref<408x49xf32, #tpu.memory_space<vmem>>, vector<4x49xf32>
    %c0_32 = arith.constant 0 : index
    %c15 = arith.constant 15 : index
    %66 = vector.load %arg0[%c0_32, %c15] : memref<2x65xf32, #tpu.memory_space<vmem>>, vector<1x49xf32>
    %67 = vector.broadcast %66 : vector<1x49xf32> to vector<4x49xf32>
    %68 = arith.mulf %67, %65 : vector<4x49xf32>
    %69 = arith.addf %60, %68 : vector<4x49xf32>
    %c1_33 = arith.constant 1 : index
    %c15_34 = arith.constant 15 : index
    %70 = vector.load %arg0[%c1_33, %c15_34] : memref<2x65xf32, #tpu.memory_space<vmem>>, vector<1x49xf32>
    %71 = vector.broadcast %70 : vector<1x49xf32> to vector<4x49xf32>
    %72 = arith.mulf %71, %65 : vector<4x49xf32>
    %73 = arith.addf %64, %72 : vector<4x49xf32>
    %c64 = arith.constant 64 : index
    %c0_35 = arith.constant 0 : index
    %74 = vector.load %arg1[%c64, %c0_35] : memref<408x49xf32, #tpu.memory_space<vmem>>, vector<4x49xf32>
    %c0_36 = arith.constant 0 : index
    %c16_37 = arith.constant 16 : index
    %75 = vector.load %arg0[%c0_36, %c16_37] : memref<2x65xf32, #tpu.memory_space<vmem>>, vector<1x49xf32>
    %76 = vector.broadcast %75 : vector<1x49xf32> to vector<4x49xf32>
    %77 = arith.mulf %76, %74 : vector<4x49xf32>
    %78 = arith.addf %69, %77 : vector<4x49xf32>
    %c1_38 = arith.constant 1 : index
    %c16_39 = arith.constant 16 : index
    %79 = vector.load %arg0[%c1_38, %c16_39] : memref<2x65xf32, #tpu.memory_space<vmem>>, vector<1x49xf32>
    %80 = vector.broadcast %79 : vector<1x49xf32> to vector<4x49xf32>
    %81 = arith.mulf %80, %74 : vector<4x49xf32>
    %82 = arith.addf %73, %81 : vector<4x49xf32>
    %83 = arith.mulf %78, %78 : vector<4x49xf32>
    %84 = arith.addf %78, %82 : vector<4x49xf32>
    %85 = arith.mulf %82, %82 : vector<4x49xf32>
    %86 = arith.addf %83, %85 : vector<4x49xf32>
    %cst_40 = arith.constant dense<0.000000e+00> : vector<4xf32>
    %87 = vector.multi_reduction <add>, %84, %cst_40 [1] : vector<4x49xf32> to vector<4xf32>
    %88 = vector.shape_cast %87 : vector<4xf32> to vector<4x1xf32>
    %cst_41 = arith.constant dense<0.000000e+00> : vector<4xf32>
    %89 = vector.multi_reduction <add>, %86, %cst_41 [1] : vector<4x49xf32> to vector<4xf32>
    %90 = vector.shape_cast %89 : vector<4xf32> to vector<4x1xf32>
    %cst_42 = arith.constant 2.000000e-02 : f32
    %91 = vector.broadcast %cst_42 : f32 to vector<4x1xf32>
    %92 = arith.mulf %88, %91 : vector<4x1xf32>
    %cst_43 = arith.constant 2.000000e-02 : f32
    %93 = vector.broadcast %cst_43 : f32 to vector<4x1xf32>
    %94 = arith.mulf %90, %93 : vector<4x1xf32>
    %95 = arith.mulf %92, %92 : vector<4x1xf32>
    %96 = arith.subf %94, %95 : vector<4x1xf32>
    %c360 = arith.constant 360 : index
    %c0_44 = arith.constant 0 : index
    %97 = vector.load %arg1[%c360, %c0_44] : memref<408x49xf32, #tpu.memory_space<vmem>>, vector<4x49xf32>
    %c368 = arith.constant 368 : index
    %c0_45 = arith.constant 0 : index
    %98 = vector.load %arg1[%c368, %c0_45] : memref<408x49xf32, #tpu.memory_space<vmem>>, vector<4x49xf32>
    %cst_46 = arith.constant 9.99999974E-6 : f32
    %99 = vector.broadcast %cst_46 : f32 to vector<4x1xf32>
    %100 = arith.addf %96, %99 : vector<4x1xf32>
    %101 = math.rsqrt %100 : vector<4x1xf32>
    %102 = vector.broadcast %101 : vector<4x1xf32> to vector<4x49xf32>
    %103 = arith.mulf %102, %97 : vector<4x49xf32>
    %104 = vector.broadcast %92 : vector<4x1xf32> to vector<4x49xf32>
    %105 = arith.mulf %104, %103 : vector<4x49xf32>
    %106 = arith.subf %98, %105 : vector<4x49xf32>
    %cst_47 = arith.constant 0.000000e+00 : f32
    %107 = vector.broadcast %cst_47 : f32 to vector<8x8xf32>
    %c0_48 = arith.constant 0 : index
    %c0_49 = arith.constant 0 : index
    %108 = vector.load %arg3[%c0_48, %c0_49] : memref<8x65xf32, #tpu.memory_space<vmem>>, vector<8x8xf32>
    tpu.vector_store %arg3[%c0_48, %c0_49], %107 {strides = array<i32>} : memref<8x65xf32, #tpu.memory_space<vmem>>, vector<8x8xf32>,
    %cst_50 = arith.constant 0.000000e+00 : f32
    %109 = vector.broadcast %cst_50 : f32 to vector<8x8xf32>
    %c0_51 = arith.constant 0 : index
    %c57 = arith.constant 57 : index
    %110 = vector.load %arg3[%c0_51, %c57] : memref<8x65xf32, #tpu.memory_space<vmem>>, vector<8x8xf32>
    tpu.vector_store %arg3[%c0_51, %c57], %109 {strides = array<i32>} : memref<8x65xf32, #tpu.memory_space<vmem>>, vector<8x8xf32>,
    %111 = arith.mulf %78, %103 : vector<4x49xf32>
    %112 = arith.addf %111, %106 : vector<4x49xf32>
    %cst_52 = arith.constant 0.000000e+00 : f32
    %113 = vector.broadcast %cst_52 : f32 to vector<4x49xf32>
    %114 = arith.cmpf oge, %112, %113 : vector<4x49xf32>
    %cst_53 = arith.constant 2.000000e-01 : f32
    %115 = vector.broadcast %cst_53 : f32 to vector<4x49xf32>
    %116 = arith.mulf %115, %112 : vector<4x49xf32>
    %117 = arith.select %114, %112, %116 : vector<4x49xi1>, vector<4x49xf32>
    %c0_54 = arith.constant 0 : index
    %c8_55 = arith.constant 8 : index
    %118 = vector.load %arg3[%c0_54, %c8_55] : memref<8x65xf32, #tpu.memory_space<vmem>>, vector<4x49xf32>
    tpu.vector_store %arg3[%c0_54, %c8_55], %117 {strides = array<i32>} : memref<8x65xf32, #tpu.memory_space<vmem>>, vector<4x49xf32>,
    %119 = arith.mulf %82, %103 : vector<4x49xf32>
    %120 = arith.addf %119, %106 : vector<4x49xf32>
    %cst_56 = arith.constant 0.000000e+00 : f32
    %121 = vector.broadcast %cst_56 : f32 to vector<4x49xf32>
    %122 = arith.cmpf oge, %120, %121 : vector<4x49xf32>
    %cst_57 = arith.constant 2.000000e-01 : f32
    %123 = vector.broadcast %cst_57 : f32 to vector<4x49xf32>
    %124 = arith.mulf %123, %120 : vector<4x49xf32>
    %125 = arith.select %122, %120, %124 : vector<4x49xi1>, vector<4x49xf32>
    %c4 = arith.constant 4 : index
    %c8_58 = arith.constant 8 : index
    %126 = vector.load %arg3[%c4, %c8_58] : memref<8x65xf32, #tpu.memory_space<vmem>>, vector<4x49xf32>
    tpu.vector_store %arg3[%c4, %c8_58], %125 {strides = array<i32>} : memref<8x65xf32, #tpu.memory_space<vmem>>, vector<4x49xf32>,
    %cst_59 = arith.constant 0.000000e+00 : f32
    %127 = vector.broadcast %cst_59 : f32 to vector<8x49xf32>
    %cst_60 = arith.constant 0.000000e+00 : f32
    %128 = vector.broadcast %cst_60 : f32 to vector<8x49xf32>
    %c72 = arith.constant 72 : index
    %c0_61 = arith.constant 0 : index
    %129 = vector.load %arg1[%c72, %c0_61] : memref<408x49xf32, #tpu.memory_space<vmem>>, vector<8x49xf32>
    %c0_62 = arith.constant 0 : index
    %c0_63 = arith.constant 0 : index
    %130 = vector.load %arg3[%c0_62, %c0_63] : memref<8x65xf32, #tpu.memory_space<vmem>>, vector<1x49xf32>
    %131 = vector.broadcast %130 : vector<1x49xf32> to vector<8x49xf32>
    %132 = arith.mulf %131, %129 : vector<8x49xf32>
    %133 = arith.addf %127, %132 : vector<8x49xf32>
    %c4_64 = arith.constant 4 : index
    %c0_65 = arith.constant 0 : index
    %134 = vector.load %arg3[%c4_64, %c0_65] : memref<8x65xf32, #tpu.memory_space<vmem>>, vector<1x49xf32>
    %135 = vector.broadcast %134 : vector<1x49xf32> to vector<8x49xf32>
    %136 = arith.mulf %135, %129 : vector<8x49xf32>
    %137 = arith.addf %128, %136 : vector<8x49xf32>
    %c80 = arith.constant 80 : index
    %c0_66 = arith.constant 0 : index
    %138 = vector.load %arg1[%c80, %c0_66] : memref<408x49xf32, #tpu.memory_space<vmem>>, vector<8x49xf32>
    %c0_67 = arith.constant 0 : index
    %c1_68 = arith.constant 1 : index
    %139 = vector.load %arg3[%c0_67, %c1_68] : memref<8x65xf32, #tpu.memory_space<vmem>>, vector<1x49xf32>
    %140 = vector.broadcast %139 : vector<1x49xf32> to vector<8x49xf32>
    %141 = arith.mulf %140, %138 : vector<8x49xf32>
    %142 = arith.addf %133, %141 : vector<8x49xf32>
    %c4_69 = arith.constant 4 : index
    %c1_70 = arith.constant 1 : index
    %143 = vector.load %arg3[%c4_69, %c1_70] : memref<8x65xf32, #tpu.memory_space<vmem>>, vector<1x49xf32>
    %144 = vector.broadcast %143 : vector<1x49xf32> to vector<8x49xf32>
    %145 = arith.mulf %144, %138 : vector<8x49xf32>
    %146 = arith.addf %137, %145 : vector<8x49xf32>
    %c88 = arith.constant 88 : index
    %c0_71 = arith.constant 0 : index
    %147 = vector.load %arg1[%c88, %c0_71] : memref<408x49xf32, #tpu.memory_space<vmem>>, vector<8x49xf32>
    %c0_72 = arith.constant 0 : index
    %c2_73 = arith.constant 2 : index
    %148 = vector.load %arg3[%c0_72, %c2_73] : memref<8x65xf32, #tpu.memory_space<vmem>>, vector<1x49xf32>
    %149 = vector.broadcast %148 : vector<1x49xf32> to vector<8x49xf32>
    %150 = arith.mulf %149, %147 : vector<8x49xf32>
    %151 = arith.addf %142, %150 : vector<8x49xf32>
    %c4_74 = arith.constant 4 : index
    %c2_75 = arith.constant 2 : index
    %152 = vector.load %arg3[%c4_74, %c2_75] : memref<8x65xf32, #tpu.memory_space<vmem>>, vector<1x49xf32>
    %153 = vector.broadcast %152 : vector<1x49xf32> to vector<8x49xf32>
    %154 = arith.mulf %153, %147 : vector<8x49xf32>
    %155 = arith.addf %146, %154 : vector<8x49xf32>
    %c96 = arith.constant 96 : index
    %c0_76 = arith.constant 0 : index
    %156 = vector.load %arg1[%c96, %c0_76] : memref<408x49xf32, #tpu.memory_space<vmem>>, vector<8x49xf32>
    %c0_77 = arith.constant 0 : index
    %c7_78 = arith.constant 7 : index
    %157 = vector.load %arg3[%c0_77, %c7_78] : memref<8x65xf32, #tpu.memory_space<vmem>>, vector<1x49xf32>
    %158 = vector.broadcast %157 : vector<1x49xf32> to vector<8x49xf32>
    %159 = arith.mulf %158, %156 : vector<8x49xf32>
    %160 = arith.addf %151, %159 : vector<8x49xf32>
    %c4_79 = arith.constant 4 : index
    %c7_80 = arith.constant 7 : index
    %161 = vector.load %arg3[%c4_79, %c7_80] : memref<8x65xf32, #tpu.memory_space<vmem>>, vector<1x49xf32>
    %162 = vector.broadcast %161 : vector<1x49xf32> to vector<8x49xf32>
    %163 = arith.mulf %162, %156 : vector<8x49xf32>
    %164 = arith.addf %155, %163 : vector<8x49xf32>
    %c104 = arith.constant 104 : index
    %c0_81 = arith.constant 0 : index
    %165 = vector.load %arg1[%c104, %c0_81] : memref<408x49xf32, #tpu.memory_space<vmem>>, vector<8x49xf32>
    %c0_82 = arith.constant 0 : index
    %c8_83 = arith.constant 8 : index
    %166 = vector.load %arg3[%c0_82, %c8_83] : memref<8x65xf32, #tpu.memory_space<vmem>>, vector<1x49xf32>
    %167 = vector.broadcast %166 : vector<1x49xf32> to vector<8x49xf32>
    %168 = arith.mulf %167, %165 : vector<8x49xf32>
    %169 = arith.addf %160, %168 : vector<8x49xf32>
    %c4_84 = arith.constant 4 : index
    %c8_85 = arith.constant 8 : index
    %170 = vector.load %arg3[%c4_84, %c8_85] : memref<8x65xf32, #tpu.memory_space<vmem>>, vector<1x49xf32>
    %171 = vector.broadcast %170 : vector<1x49xf32> to vector<8x49xf32>
    %172 = arith.mulf %171, %165 : vector<8x49xf32>
    %173 = arith.addf %164, %172 : vector<8x49xf32>
    %c112 = arith.constant 112 : index
    %c0_86 = arith.constant 0 : index
    %174 = vector.load %arg1[%c112, %c0_86] : memref<408x49xf32, #tpu.memory_space<vmem>>, vector<8x49xf32>
    %c0_87 = arith.constant 0 : index
    %c9_88 = arith.constant 9 : index
    %175 = vector.load %arg3[%c0_87, %c9_88] : memref<8x65xf32, #tpu.memory_space<vmem>>, vector<1x49xf32>
    %176 = vector.broadcast %175 : vector<1x49xf32> to vector<8x49xf32>
    %177 = arith.mulf %176, %174 : vector<8x49xf32>
    %178 = arith.addf %169, %177 : vector<8x49xf32>
    %c4_89 = arith.constant 4 : index
    %c9_90 = arith.constant 9 : index
    %179 = vector.load %arg3[%c4_89, %c9_90] : memref<8x65xf32, #tpu.memory_space<vmem>>, vector<1x49xf32>
    %180 = vector.broadcast %179 : vector<1x49xf32> to vector<8x49xf32>
    %181 = arith.mulf %180, %174 : vector<8x49xf32>
    %182 = arith.addf %173, %181 : vector<8x49xf32>
    %c120 = arith.constant 120 : index
    %c0_91 = arith.constant 0 : index
    %183 = vector.load %arg1[%c120, %c0_91] : memref<408x49xf32, #tpu.memory_space<vmem>>, vector<8x49xf32>
    %c0_92 = arith.constant 0 : index
    %c14_93 = arith.constant 14 : index
    %184 = vector.load %arg3[%c0_92, %c14_93] : memref<8x65xf32, #tpu.memory_space<vmem>>, vector<1x49xf32>
    %185 = vector.broadcast %184 : vector<1x49xf32> to vector<8x49xf32>
    %186 = arith.mulf %185, %183 : vector<8x49xf32>
    %187 = arith.addf %178, %186 : vector<8x49xf32>
    %c4_94 = arith.constant 4 : index
    %c14_95 = arith.constant 14 : index
    %188 = vector.load %arg3[%c4_94, %c14_95] : memref<8x65xf32, #tpu.memory_space<vmem>>, vector<1x49xf32>
    %189 = vector.broadcast %188 : vector<1x49xf32> to vector<8x49xf32>
    %190 = arith.mulf %189, %183 : vector<8x49xf32>
    %191 = arith.addf %182, %190 : vector<8x49xf32>
    %c128 = arith.constant 128 : index
    %c0_96 = arith.constant 0 : index
    %192 = vector.load %arg1[%c128, %c0_96] : memref<408x49xf32, #tpu.memory_space<vmem>>, vector<8x49xf32>
    %c0_97 = arith.constant 0 : index
    %c15_98 = arith.constant 15 : index
    %193 = vector.load %arg3[%c0_97, %c15_98] : memref<8x65xf32, #tpu.memory_space<vmem>>, vector<1x49xf32>
    %194 = vector.broadcast %193 : vector<1x49xf32> to vector<8x49xf32>
    %195 = arith.mulf %194, %192 : vector<8x49xf32>
    %196 = arith.addf %187, %195 : vector<8x49xf32>
    %c4_99 = arith.constant 4 : index
    %c15_100 = arith.constant 15 : index
    %197 = vector.load %arg3[%c4_99, %c15_100] : memref<8x65xf32, #tpu.memory_space<vmem>>, vector<1x49xf32>
    %198 = vector.broadcast %197 : vector<1x49xf32> to vector<8x49xf32>
    %199 = arith.mulf %198, %192 : vector<8x49xf32>
    %200 = arith.addf %191, %199 : vector<8x49xf32>
    %c136 = arith.constant 136 : index
    %c0_101 = arith.constant 0 : index
    %201 = vector.load %arg1[%c136, %c0_101] : memref<408x49xf32, #tpu.memory_space<vmem>>, vector<8x49xf32>
    %c0_102 = arith.constant 0 : index
    %c16_103 = arith.constant 16 : index
    %202 = vector.load %arg3[%c0_102, %c16_103] : memref<8x65xf32, #tpu.memory_space<vmem>>, vector<1x49xf32>
    %203 = vector.broadcast %202 : vector<1x49xf32> to vector<8x49xf32>
    %204 = arith.mulf %203, %201 : vector<8x49xf32>
    %205 = arith.addf %196, %204 : vector<8x49xf32>
    %c4_104 = arith.constant 4 : index
    %c16_105 = arith.constant 16 : index
    %206 = vector.load %arg3[%c4_104, %c16_105] : memref<8x65xf32, #tpu.memory_space<vmem>>, vector<1x49xf32>
    %207 = vector.broadcast %206 : vector<1x49xf32> to vector<8x49xf32>
    %208 = arith.mulf %207, %201 : vector<8x49xf32>
    %209 = arith.addf %200, %208 : vector<8x49xf32>
    %c144 = arith.constant 144 : index
    %c0_106 = arith.constant 0 : index
    %210 = vector.load %arg1[%c144, %c0_106] : memref<408x49xf32, #tpu.memory_space<vmem>>, vector<8x49xf32>
    %c1_107 = arith.constant 1 : index
    %c0_108 = arith.constant 0 : index
    %211 = vector.load %arg3[%c1_107, %c0_108] : memref<8x65xf32, #tpu.memory_space<vmem>>, vector<1x49xf32>
    %212 = vector.broadcast %211 : vector<1x49xf32> to vector<8x49xf32>
    %213 = arith.mulf %212, %210 : vector<8x49xf32>
    %214 = arith.addf %205, %213 : vector<8x49xf32>
    %c5 = arith.constant 5 : index
    %c0_109 = arith.constant 0 : index
    %215 = vector.load %arg3[%c5, %c0_109] : memref<8x65xf32, #tpu.memory_space<vmem>>, vector<1x49xf32>
    %216 = vector.broadcast %215 : vector<1x49xf32> to vector<8x49xf32>
    %217 = arith.mulf %216, %210 : vector<8x49xf32>
    %218 = arith.addf %209, %217 : vector<8x49xf32>
    %c152 = arith.constant 152 : index
    %c0_110 = arith.constant 0 : index
    %219 = vector.load %arg1[%c152, %c0_110] : memref<408x49xf32, #tpu.memory_space<vmem>>, vector<8x49xf32>
    %c1_111 = arith.constant 1 : index
    %c1_112 = arith.constant 1 : index
    %220 = vector.load %arg3[%c1_111, %c1_112] : memref<8x65xf32, #tpu.memory_space<vmem>>, vector<1x49xf32>
    %221 = vector.broadcast %220 : vector<1x49xf32> to vector<8x49xf32>
    %222 = arith.mulf %221, %219 : vector<8x49xf32>
    %223 = arith.addf %214, %222 : vector<8x49xf32>
    %c5_113 = arith.constant 5 : index
    %c1_114 = arith.constant 1 : index
    %224 = vector.load %arg3[%c5_113, %c1_114] : memref<8x65xf32, #tpu.memory_space<vmem>>, vector<1x49xf32>
    %225 = vector.broadcast %224 : vector<1x49xf32> to vector<8x49xf32>
    %226 = arith.mulf %225, %219 : vector<8x49xf32>
    %227 = arith.addf %218, %226 : vector<8x49xf32>
    %c160 = arith.constant 160 : index
    %c0_115 = arith.constant 0 : index
    %228 = vector.load %arg1[%c160, %c0_115] : memref<408x49xf32, #tpu.memory_space<vmem>>, vector<8x49xf32>
    %c1_116 = arith.constant 1 : index
    %c2_117 = arith.constant 2 : index
    %229 = vector.load %arg3[%c1_116, %c2_117] : memref<8x65xf32, #tpu.memory_space<vmem>>, vector<1x49xf32>
    %230 = vector.broadcast %229 : vector<1x49xf32> to vector<8x49xf32>
    %231 = arith.mulf %230, %228 : vector<8x49xf32>
    %232 = arith.addf %223, %231 : vector<8x49xf32>
    %c5_118 = arith.constant 5 : index
    %c2_119 = arith.constant 2 : index
    %233 = vector.load %arg3[%c5_118, %c2_119] : memref<8x65xf32, #tpu.memory_space<vmem>>, vector<1x49xf32>
    %234 = vector.broadcast %233 : vector<1x49xf32> to vector<8x49xf32>
    %235 = arith.mulf %234, %228 : vector<8x49xf32>
    %236 = arith.addf %227, %235 : vector<8x49xf32>
    %c168 = arith.constant 168 : index
    %c0_120 = arith.constant 0 : index
    %237 = vector.load %arg1[%c168, %c0_120] : memref<408x49xf32, #tpu.memory_space<vmem>>, vector<8x49xf32>
    %c1_121 = arith.constant 1 : index
    %c7_122 = arith.constant 7 : index
    %238 = vector.load %arg3[%c1_121, %c7_122] : memref<8x65xf32, #tpu.memory_space<vmem>>, vector<1x49xf32>
    %239 = vector.broadcast %238 : vector<1x49xf32> to vector<8x49xf32>
    %240 = arith.mulf %239, %237 : vector<8x49xf32>
    %241 = arith.addf %232, %240 : vector<8x49xf32>
    %c5_123 = arith.constant 5 : index
    %c7_124 = arith.constant 7 : index
    %242 = vector.load %arg3[%c5_123, %c7_124] : memref<8x65xf32, #tpu.memory_space<vmem>>, vector<1x49xf32>
    %243 = vector.broadcast %242 : vector<1x49xf32> to vector<8x49xf32>
    %244 = arith.mulf %243, %237 : vector<8x49xf32>
    %245 = arith.addf %236, %244 : vector<8x49xf32>
    %c176 = arith.constant 176 : index
    %c0_125 = arith.constant 0 : index
    %246 = vector.load %arg1[%c176, %c0_125] : memref<408x49xf32, #tpu.memory_space<vmem>>, vector<8x49xf32>
    %c1_126 = arith.constant 1 : index
    %c8_127 = arith.constant 8 : index
    %247 = vector.load %arg3[%c1_126, %c8_127] : memref<8x65xf32, #tpu.memory_space<vmem>>, vector<1x49xf32>
    %248 = vector.broadcast %247 : vector<1x49xf32> to vector<8x49xf32>
    %249 = arith.mulf %248, %246 : vector<8x49xf32>
    %250 = arith.addf %241, %249 : vector<8x49xf32>
    %c5_128 = arith.constant 5 : index
    %c8_129 = arith.constant 8 : index
    %251 = vector.load %arg3[%c5_128, %c8_129] : memref<8x65xf32, #tpu.memory_space<vmem>>, vector<1x49xf32>
    %252 = vector.broadcast %251 : vector<1x49xf32> to vector<8x49xf32>
    %253 = arith.mulf %252, %246 : vector<8x49xf32>
    %254 = arith.addf %245, %253 : vector<8x49xf32>
    %c184 = arith.constant 184 : index
    %c0_130 = arith.constant 0 : index
    %255 = vector.load %arg1[%c184, %c0_130] : memref<408x49xf32, #tpu.memory_space<vmem>>, vector<8x49xf32>
    %c1_131 = arith.constant 1 : index
    %c9_132 = arith.constant 9 : index
    %256 = vector.load %arg3[%c1_131, %c9_132] : memref<8x65xf32, #tpu.memory_space<vmem>>, vector<1x49xf32>
    %257 = vector.broadcast %256 : vector<1x49xf32> to vector<8x49xf32>
    %258 = arith.mulf %257, %255 : vector<8x49xf32>
    %259 = arith.addf %250, %258 : vector<8x49xf32>
    %c5_133 = arith.constant 5 : index
    %c9_134 = arith.constant 9 : index
    %260 = vector.load %arg3[%c5_133, %c9_134] : memref<8x65xf32, #tpu.memory_space<vmem>>, vector<1x49xf32>
    %261 = vector.broadcast %260 : vector<1x49xf32> to vector<8x49xf32>
    %262 = arith.mulf %261, %255 : vector<8x49xf32>
    %263 = arith.addf %254, %262 : vector<8x49xf32>
    %c192 = arith.constant 192 : index
    %c0_135 = arith.constant 0 : index
    %264 = vector.load %arg1[%c192, %c0_135] : memref<408x49xf32, #tpu.memory_space<vmem>>, vector<8x49xf32>
    %c1_136 = arith.constant 1 : index
    %c14_137 = arith.constant 14 : index
    %265 = vector.load %arg3[%c1_136, %c14_137] : memref<8x65xf32, #tpu.memory_space<vmem>>, vector<1x49xf32>
    %266 = vector.broadcast %265 : vector<1x49xf32> to vector<8x49xf32>
    %267 = arith.mulf %266, %264 : vector<8x49xf32>
    %268 = arith.addf %259, %267 : vector<8x49xf32>
    %c5_138 = arith.constant 5 : index
    %c14_139 = arith.constant 14 : index
    %269 = vector.load %arg3[%c5_138, %c14_139] : memref<8x65xf32, #tpu.memory_space<vmem>>, vector<1x49xf32>
    %270 = vector.broadcast %269 : vector<1x49xf32> to vector<8x49xf32>
    %271 = arith.mulf %270, %264 : vector<8x49xf32>
    %272 = arith.addf %263, %271 : vector<8x49xf32>
    %c200 = arith.constant 200 : index
    %c0_140 = arith.constant 0 : index
    %273 = vector.load %arg1[%c200, %c0_140] : memref<408x49xf32, #tpu.memory_space<vmem>>, vector<8x49xf32>
    %c1_141 = arith.constant 1 : index
    %c15_142 = arith.constant 15 : index
    %274 = vector.load %arg3[%c1_141, %c15_142] : memref<8x65xf32, #tpu.memory_space<vmem>>, vector<1x49xf32>
    %275 = vector.broadcast %274 : vector<1x49xf32> to vector<8x49xf32>
    %276 = arith.mulf %275, %273 : vector<8x49xf32>
    %277 = arith.addf %268, %276 : vector<8x49xf32>
    %c5_143 = arith.constant 5 : index
    %c15_144 = arith.constant 15 : index
    %278 = vector.load %arg3[%c5_143, %c15_144] : memref<8x65xf32, #tpu.memory_space<vmem>>, vector<1x49xf32>
    %279 = vector.broadcast %278 : vector<1x49xf32> to vector<8x49xf32>
    %280 = arith.mulf %279, %273 : vector<8x49xf32>
    %281 = arith.addf %272, %280 : vector<8x49xf32>
    %c208 = arith.constant 208 : index
    %c0_145 = arith.constant 0 : index
    %282 = vector.load %arg1[%c208, %c0_145] : memref<408x49xf32, #tpu.memory_space<vmem>>, vector<8x49xf32>
    %c1_146 = arith.constant 1 : index
    %c16_147 = arith.constant 16 : index
    %283 = vector.load %arg3[%c1_146, %c16_147] : memref<8x65xf32, #tpu.memory_space<vmem>>, vector<1x49xf32>
    %284 = vector.broadcast %283 : vector<1x49xf32> to vector<8x49xf32>
    %285 = arith.mulf %284, %282 : vector<8x49xf32>
    %286 = arith.addf %277, %285 : vector<8x49xf32>
    %c5_148 = arith.constant 5 : index
    %c16_149 = arith.constant 16 : index
    %287 = vector.load %arg3[%c5_148, %c16_149] : memref<8x65xf32, #tpu.memory_space<vmem>>, vector<1x49xf32>
    %288 = vector.broadcast %287 : vector<1x49xf32> to vector<8x49xf32>
    %289 = arith.mulf %288, %282 : vector<8x49xf32>
    %290 = arith.addf %281, %289 : vector<8x49xf32>
    %c216 = arith.constant 216 : index
    %c0_150 = arith.constant 0 : index
    %291 = vector.load %arg1[%c216, %c0_150] : memref<408x49xf32, #tpu.memory_space<vmem>>, vector<8x49xf32>
    %c2_151 = arith.constant 2 : index
    %c0_152 = arith.constant 0 : index
    %292 = vector.load %arg3[%c2_151, %c0_152] : memref<8x65xf32, #tpu.memory_space<vmem>>, vector<1x49xf32>
    %293 = vector.broadcast %292 : vector<1x49xf32> to vector<8x49xf32>
    %294 = arith.mulf %293, %291 : vector<8x49xf32>
    %295 = arith.addf %286, %294 : vector<8x49xf32>
    %c6 = arith.constant 6 : index
    %c0_153 = arith.constant 0 : index
    %296 = vector.load %arg3[%c6, %c0_153] : memref<8x65xf32, #tpu.memory_space<vmem>>, vector<1x49xf32>
    %297 = vector.broadcast %296 : vector<1x49xf32> to vector<8x49xf32>
    %298 = arith.mulf %297, %291 : vector<8x49xf32>
    %299 = arith.addf %290, %298 : vector<8x49xf32>
    %c224 = arith.constant 224 : index
    %c0_154 = arith.constant 0 : index
    %300 = vector.load %arg1[%c224, %c0_154] : memref<408x49xf32, #tpu.memory_space<vmem>>, vector<8x49xf32>
    %c2_155 = arith.constant 2 : index
    %c1_156 = arith.constant 1 : index
    %301 = vector.load %arg3[%c2_155, %c1_156] : memref<8x65xf32, #tpu.memory_space<vmem>>, vector<1x49xf32>
    %302 = vector.broadcast %301 : vector<1x49xf32> to vector<8x49xf32>
    %303 = arith.mulf %302, %300 : vector<8x49xf32>
    %304 = arith.addf %295, %303 : vector<8x49xf32>
    %c6_157 = arith.constant 6 : index
    %c1_158 = arith.constant 1 : index
    %305 = vector.load %arg3[%c6_157, %c1_158] : memref<8x65xf32, #tpu.memory_space<vmem>>, vector<1x49xf32>
    %306 = vector.broadcast %305 : vector<1x49xf32> to vector<8x49xf32>
    %307 = arith.mulf %306, %300 : vector<8x49xf32>
    %308 = arith.addf %299, %307 : vector<8x49xf32>
    %c232 = arith.constant 232 : index
    %c0_159 = arith.constant 0 : index
    %309 = vector.load %arg1[%c232, %c0_159] : memref<408x49xf32, #tpu.memory_space<vmem>>, vector<8x49xf32>
    %c2_160 = arith.constant 2 : index
    %c2_161 = arith.constant 2 : index
    %310 = vector.load %arg3[%c2_160, %c2_161] : memref<8x65xf32, #tpu.memory_space<vmem>>, vector<1x49xf32>
    %311 = vector.broadcast %310 : vector<1x49xf32> to vector<8x49xf32>
    %312 = arith.mulf %311, %309 : vector<8x49xf32>
    %313 = arith.addf %304, %312 : vector<8x49xf32>
    %c6_162 = arith.constant 6 : index
    %c2_163 = arith.constant 2 : index
    %314 = vector.load %arg3[%c6_162, %c2_163] : memref<8x65xf32, #tpu.memory_space<vmem>>, vector<1x49xf32>
    %315 = vector.broadcast %314 : vector<1x49xf32> to vector<8x49xf32>
    %316 = arith.mulf %315, %309 : vector<8x49xf32>
    %317 = arith.addf %308, %316 : vector<8x49xf32>
    %c240 = arith.constant 240 : index
    %c0_164 = arith.constant 0 : index
    %318 = vector.load %arg1[%c240, %c0_164] : memref<408x49xf32, #tpu.memory_space<vmem>>, vector<8x49xf32>
    %c2_165 = arith.constant 2 : index
    %c7_166 = arith.constant 7 : index
    %319 = vector.load %arg3[%c2_165, %c7_166] : memref<8x65xf32, #tpu.memory_space<vmem>>, vector<1x49xf32>
    %320 = vector.broadcast %319 : vector<1x49xf32> to vector<8x49xf32>
    %321 = arith.mulf %320, %318 : vector<8x49xf32>
    %322 = arith.addf %313, %321 : vector<8x49xf32>
    %c6_167 = arith.constant 6 : index
    %c7_168 = arith.constant 7 : index
    %323 = vector.load %arg3[%c6_167, %c7_168] : memref<8x65xf32, #tpu.memory_space<vmem>>, vector<1x49xf32>
    %324 = vector.broadcast %323 : vector<1x49xf32> to vector<8x49xf32>
    %325 = arith.mulf %324, %318 : vector<8x49xf32>
    %326 = arith.addf %317, %325 : vector<8x49xf32>
    %c248 = arith.constant 248 : index
    %c0_169 = arith.constant 0 : index
    %327 = vector.load %arg1[%c248, %c0_169] : memref<408x49xf32, #tpu.memory_space<vmem>>, vector<8x49xf32>
    %c2_170 = arith.constant 2 : index
    %c8_171 = arith.constant 8 : index
    %328 = vector.load %arg3[%c2_170, %c8_171] : memref<8x65xf32, #tpu.memory_space<vmem>>, vector<1x49xf32>
    %329 = vector.broadcast %328 : vector<1x49xf32> to vector<8x49xf32>
    %330 = arith.mulf %329, %327 : vector<8x49xf32>
    %331 = arith.addf %322, %330 : vector<8x49xf32>
    %c6_172 = arith.constant 6 : index
    %c8_173 = arith.constant 8 : index
    %332 = vector.load %arg3[%c6_172, %c8_173] : memref<8x65xf32, #tpu.memory_space<vmem>>, vector<1x49xf32>
    %333 = vector.broadcast %332 : vector<1x49xf32> to vector<8x49xf32>
    %334 = arith.mulf %333, %327 : vector<8x49xf32>
    %335 = arith.addf %326, %334 : vector<8x49xf32>
    %c256 = arith.constant 256 : index
    %c0_174 = arith.constant 0 : index
    %336 = vector.load %arg1[%c256, %c0_174] : memref<408x49xf32, #tpu.memory_space<vmem>>, vector<8x49xf32>
    %c2_175 = arith.constant 2 : index
    %c9_176 = arith.constant 9 : index
    %337 = vector.load %arg3[%c2_175, %c9_176] : memref<8x65xf32, #tpu.memory_space<vmem>>, vector<1x49xf32>
    %338 = vector.broadcast %337 : vector<1x49xf32> to vector<8x49xf32>
    %339 = arith.mulf %338, %336 : vector<8x49xf32>
    %340 = arith.addf %331, %339 : vector<8x49xf32>
    %c6_177 = arith.constant 6 : index
    %c9_178 = arith.constant 9 : index
    %341 = vector.load %arg3[%c6_177, %c9_178] : memref<8x65xf32, #tpu.memory_space<vmem>>, vector<1x49xf32>
    %342 = vector.broadcast %341 : vector<1x49xf32> to vector<8x49xf32>
    %343 = arith.mulf %342, %336 : vector<8x49xf32>
    %344 = arith.addf %335, %343 : vector<8x49xf32>
    %c264 = arith.constant 264 : index
    %c0_179 = arith.constant 0 : index
    %345 = vector.load %arg1[%c264, %c0_179] : memref<408x49xf32, #tpu.memory_space<vmem>>, vector<8x49xf32>
    %c2_180 = arith.constant 2 : index
    %c14_181 = arith.constant 14 : index
    %346 = vector.load %arg3[%c2_180, %c14_181] : memref<8x65xf32, #tpu.memory_space<vmem>>, vector<1x49xf32>
    %347 = vector.broadcast %346 : vector<1x49xf32> to vector<8x49xf32>
    %348 = arith.mulf %347, %345 : vector<8x49xf32>
    %349 = arith.addf %340, %348 : vector<8x49xf32>
    %c6_182 = arith.constant 6 : index
    %c14_183 = arith.constant 14 : index
    %350 = vector.load %arg3[%c6_182, %c14_183] : memref<8x65xf32, #tpu.memory_space<vmem>>, vector<1x49xf32>
    %351 = vector.broadcast %350 : vector<1x49xf32> to vector<8x49xf32>
    %352 = arith.mulf %351, %345 : vector<8x49xf32>
    %353 = arith.addf %344, %352 : vector<8x49xf32>
    %c272 = arith.constant 272 : index
    %c0_184 = arith.constant 0 : index
    %354 = vector.load %arg1[%c272, %c0_184] : memref<408x49xf32, #tpu.memory_space<vmem>>, vector<8x49xf32>
    %c2_185 = arith.constant 2 : index
    %c15_186 = arith.constant 15 : index
    %355 = vector.load %arg3[%c2_185, %c15_186] : memref<8x65xf32, #tpu.memory_space<vmem>>, vector<1x49xf32>
    %356 = vector.broadcast %355 : vector<1x49xf32> to vector<8x49xf32>
    %357 = arith.mulf %356, %354 : vector<8x49xf32>
    %358 = arith.addf %349, %357 : vector<8x49xf32>
    %c6_187 = arith.constant 6 : index
    %c15_188 = arith.constant 15 : index
    %359 = vector.load %arg3[%c6_187, %c15_188] : memref<8x65xf32, #tpu.memory_space<vmem>>, vector<1x49xf32>
    %360 = vector.broadcast %359 : vector<1x49xf32> to vector<8x49xf32>
    %361 = arith.mulf %360, %354 : vector<8x49xf32>
    %362 = arith.addf %353, %361 : vector<8x49xf32>
    %c280 = arith.constant 280 : index
    %c0_189 = arith.constant 0 : index
    %363 = vector.load %arg1[%c280, %c0_189] : memref<408x49xf32, #tpu.memory_space<vmem>>, vector<8x49xf32>
    %c2_190 = arith.constant 2 : index
    %c16_191 = arith.constant 16 : index
    %364 = vector.load %arg3[%c2_190, %c16_191] : memref<8x65xf32, #tpu.memory_space<vmem>>, vector<1x49xf32>
    %365 = vector.broadcast %364 : vector<1x49xf32> to vector<8x49xf32>
    %366 = arith.mulf %365, %363 : vector<8x49xf32>
    %367 = arith.addf %358, %366 : vector<8x49xf32>
    %c6_192 = arith.constant 6 : index
    %c16_193 = arith.constant 16 : index
    %368 = vector.load %arg3[%c6_192, %c16_193] : memref<8x65xf32, #tpu.memory_space<vmem>>, vector<1x49xf32>
    %369 = vector.broadcast %368 : vector<1x49xf32> to vector<8x49xf32>
    %370 = arith.mulf %369, %363 : vector<8x49xf32>
    %371 = arith.addf %362, %370 : vector<8x49xf32>
    %c288 = arith.constant 288 : index
    %c0_194 = arith.constant 0 : index
    %372 = vector.load %arg1[%c288, %c0_194] : memref<408x49xf32, #tpu.memory_space<vmem>>, vector<8x49xf32>
    %c3 = arith.constant 3 : index
    %c0_195 = arith.constant 0 : index
    %373 = vector.load %arg3[%c3, %c0_195] : memref<8x65xf32, #tpu.memory_space<vmem>>, vector<1x49xf32>
    %374 = vector.broadcast %373 : vector<1x49xf32> to vector<8x49xf32>
    %375 = arith.mulf %374, %372 : vector<8x49xf32>
    %376 = arith.addf %367, %375 : vector<8x49xf32>
    %c7_196 = arith.constant 7 : index
    %c0_197 = arith.constant 0 : index
    %377 = vector.load %arg3[%c7_196, %c0_197] : memref<8x65xf32, #tpu.memory_space<vmem>>, vector<1x49xf32>
    %378 = vector.broadcast %377 : vector<1x49xf32> to vector<8x49xf32>
    %379 = arith.mulf %378, %372 : vector<8x49xf32>
    %380 = arith.addf %371, %379 : vector<8x49xf32>
    %c296 = arith.constant 296 : index
    %c0_198 = arith.constant 0 : index
    %381 = vector.load %arg1[%c296, %c0_198] : memref<408x49xf32, #tpu.memory_space<vmem>>, vector<8x49xf32>
    %c3_199 = arith.constant 3 : index
    %c1_200 = arith.constant 1 : index
    %382 = vector.load %arg3[%c3_199, %c1_200] : memref<8x65xf32, #tpu.memory_space<vmem>>, vector<1x49xf32>
    %383 = vector.broadcast %382 : vector<1x49xf32> to vector<8x49xf32>
    %384 = arith.mulf %383, %381 : vector<8x49xf32>
    %385 = arith.addf %376, %384 : vector<8x49xf32>
    %c7_201 = arith.constant 7 : index
    %c1_202 = arith.constant 1 : index
    %386 = vector.load %arg3[%c7_201, %c1_202] : memref<8x65xf32, #tpu.memory_space<vmem>>, vector<1x49xf32>
    %387 = vector.broadcast %386 : vector<1x49xf32> to vector<8x49xf32>
    %388 = arith.mulf %387, %381 : vector<8x49xf32>
    %389 = arith.addf %380, %388 : vector<8x49xf32>
    %c304 = arith.constant 304 : index
    %c0_203 = arith.constant 0 : index
    %390 = vector.load %arg1[%c304, %c0_203] : memref<408x49xf32, #tpu.memory_space<vmem>>, vector<8x49xf32>
    %c3_204 = arith.constant 3 : index
    %c2_205 = arith.constant 2 : index
    %391 = vector.load %arg3[%c3_204, %c2_205] : memref<8x65xf32, #tpu.memory_space<vmem>>, vector<1x49xf32>
    %392 = vector.broadcast %391 : vector<1x49xf32> to vector<8x49xf32>
    %393 = arith.mulf %392, %390 : vector<8x49xf32>
    %394 = arith.addf %385, %393 : vector<8x49xf32>
    %c7_206 = arith.constant 7 : index
    %c2_207 = arith.constant 2 : index
    %395 = vector.load %arg3[%c7_206, %c2_207] : memref<8x65xf32, #tpu.memory_space<vmem>>, vector<1x49xf32>
    %396 = vector.broadcast %395 : vector<1x49xf32> to vector<8x49xf32>
    %397 = arith.mulf %396, %390 : vector<8x49xf32>
    %398 = arith.addf %389, %397 : vector<8x49xf32>
    %c312 = arith.constant 312 : index
    %c0_208 = arith.constant 0 : index
    %399 = vector.load %arg1[%c312, %c0_208] : memref<408x49xf32, #tpu.memory_space<vmem>>, vector<8x49xf32>
    %c3_209 = arith.constant 3 : index
    %c7_210 = arith.constant 7 : index
    %400 = vector.load %arg3[%c3_209, %c7_210] : memref<8x65xf32, #tpu.memory_space<vmem>>, vector<1x49xf32>
    %401 = vector.broadcast %400 : vector<1x49xf32> to vector<8x49xf32>
    %402 = arith.mulf %401, %399 : vector<8x49xf32>
    %403 = arith.addf %394, %402 : vector<8x49xf32>
    %c7_211 = arith.constant 7 : index
    %c7_212 = arith.constant 7 : index
    %404 = vector.load %arg3[%c7_211, %c7_212] : memref<8x65xf32, #tpu.memory_space<vmem>>, vector<1x49xf32>
    %405 = vector.broadcast %404 : vector<1x49xf32> to vector<8x49xf32>
    %406 = arith.mulf %405, %399 : vector<8x49xf32>
    %407 = arith.addf %398, %406 : vector<8x49xf32>
    %c320 = arith.constant 320 : index
    %c0_213 = arith.constant 0 : index
    %408 = vector.load %arg1[%c320, %c0_213] : memref<408x49xf32, #tpu.memory_space<vmem>>, vector<8x49xf32>
    %c3_214 = arith.constant 3 : index
    %c8_215 = arith.constant 8 : index
    %409 = vector.load %arg3[%c3_214, %c8_215] : memref<8x65xf32, #tpu.memory_space<vmem>>, vector<1x49xf32>
    %410 = vector.broadcast %409 : vector<1x49xf32> to vector<8x49xf32>
    %411 = arith.mulf %410, %408 : vector<8x49xf32>
    %412 = arith.addf %403, %411 : vector<8x49xf32>
    %c7_216 = arith.constant 7 : index
    %c8_217 = arith.constant 8 : index
    %413 = vector.load %arg3[%c7_216, %c8_217] : memref<8x65xf32, #tpu.memory_space<vmem>>, vector<1x49xf32>
    %414 = vector.broadcast %413 : vector<1x49xf32> to vector<8x49xf32>
    %415 = arith.mulf %414, %408 : vector<8x49xf32>
    %416 = arith.addf %407, %415 : vector<8x49xf32>
    %c328 = arith.constant 328 : index
    %c0_218 = arith.constant 0 : index
    %417 = vector.load %arg1[%c328, %c0_218] : memref<408x49xf32, #tpu.memory_space<vmem>>, vector<8x49xf32>
    %c3_219 = arith.constant 3 : index
    %c9_220 = arith.constant 9 : index
    %418 = vector.load %arg3[%c3_219, %c9_220] : memref<8x65xf32, #tpu.memory_space<vmem>>, vector<1x49xf32>
    %419 = vector.broadcast %418 : vector<1x49xf32> to vector<8x49xf32>
    %420 = arith.mulf %419, %417 : vector<8x49xf32>
    %421 = arith.addf %412, %420 : vector<8x49xf32>
    %c7_221 = arith.constant 7 : index
    %c9_222 = arith.constant 9 : index
    %422 = vector.load %arg3[%c7_221, %c9_222] : memref<8x65xf32, #tpu.memory_space<vmem>>, vector<1x49xf32>
    %423 = vector.broadcast %422 : vector<1x49xf32> to vector<8x49xf32>
    %424 = arith.mulf %423, %417 : vector<8x49xf32>
    %425 = arith.addf %416, %424 : vector<8x49xf32>
    %c336 = arith.constant 336 : index
    %c0_223 = arith.constant 0 : index
    %426 = vector.load %arg1[%c336, %c0_223] : memref<408x49xf32, #tpu.memory_space<vmem>>, vector<8x49xf32>
    %c3_224 = arith.constant 3 : index
    %c14_225 = arith.constant 14 : index
    %427 = vector.load %arg3[%c3_224, %c14_225] : memref<8x65xf32, #tpu.memory_space<vmem>>, vector<1x49xf32>
    %428 = vector.broadcast %427 : vector<1x49xf32> to vector<8x49xf32>
    %429 = arith.mulf %428, %426 : vector<8x49xf32>
    %430 = arith.addf %421, %429 : vector<8x49xf32>
    %c7_226 = arith.constant 7 : index
    %c14_227 = arith.constant 14 : index
    %431 = vector.load %arg3[%c7_226, %c14_227] : memref<8x65xf32, #tpu.memory_space<vmem>>, vector<1x49xf32>
    %432 = vector.broadcast %431 : vector<1x49xf32> to vector<8x49xf32>
    %433 = arith.mulf %432, %426 : vector<8x49xf32>
    %434 = arith.addf %425, %433 : vector<8x49xf32>
    %c344 = arith.constant 344 : index
    %c0_228 = arith.constant 0 : index
    %435 = vector.load %arg1[%c344, %c0_228] : memref<408x49xf32, #tpu.memory_space<vmem>>, vector<8x49xf32>
    %c3_229 = arith.constant 3 : index
    %c15_230 = arith.constant 15 : index
    %436 = vector.load %arg3[%c3_229, %c15_230] : memref<8x65xf32, #tpu.memory_space<vmem>>, vector<1x49xf32>
    %437 = vector.broadcast %436 : vector<1x49xf32> to vector<8x49xf32>
    %438 = arith.mulf %437, %435 : vector<8x49xf32>
    %439 = arith.addf %430, %438 : vector<8x49xf32>
    %c7_231 = arith.constant 7 : index
    %c15_232 = arith.constant 15 : index
    %440 = vector.load %arg3[%c7_231, %c15_232] : memref<8x65xf32, #tpu.memory_space<vmem>>, vector<1x49xf32>
    %441 = vector.broadcast %440 : vector<1x49xf32> to vector<8x49xf32>
    %442 = arith.mulf %441, %435 : vector<8x49xf32>
    %443 = arith.addf %434, %442 : vector<8x49xf32>
    %c352 = arith.constant 352 : index
    %c0_233 = arith.constant 0 : index
    %444 = vector.load %arg1[%c352, %c0_233] : memref<408x49xf32, #tpu.memory_space<vmem>>, vector<8x49xf32>
    %c3_234 = arith.constant 3 : index
    %c16_235 = arith.constant 16 : index
    %445 = vector.load %arg3[%c3_234, %c16_235] : memref<8x65xf32, #tpu.memory_space<vmem>>, vector<1x49xf32>
    %446 = vector.broadcast %445 : vector<1x49xf32> to vector<8x49xf32>
    %447 = arith.mulf %446, %444 : vector<8x49xf32>
    %448 = arith.addf %439, %447 : vector<8x49xf32>
    %c7_236 = arith.constant 7 : index
    %c16_237 = arith.constant 16 : index
    %449 = vector.load %arg3[%c7_236, %c16_237] : memref<8x65xf32, #tpu.memory_space<vmem>>, vector<1x49xf32>
    %450 = vector.broadcast %449 : vector<1x49xf32> to vector<8x49xf32>
    %451 = arith.mulf %450, %444 : vector<8x49xf32>
    %452 = arith.addf %443, %451 : vector<8x49xf32>
    %453 = arith.mulf %448, %448 : vector<8x49xf32>
    %454 = arith.addf %448, %452 : vector<8x49xf32>
    %455 = arith.mulf %452, %452 : vector<8x49xf32>
    %456 = arith.addf %453, %455 : vector<8x49xf32>
    %cst_238 = arith.constant dense<0.000000e+00> : vector<8xf32>
    %457 = vector.multi_reduction <add>, %454, %cst_238 [1] : vector<8x49xf32> to vector<8xf32>
    %458 = vector.shape_cast %457 : vector<8xf32> to vector<8x1xf32>
    %cst_239 = arith.constant dense<0.000000e+00> : vector<8xf32>
    %459 = vector.multi_reduction <add>, %456, %cst_239 [1] : vector<8x49xf32> to vector<8xf32>
    %460 = vector.shape_cast %459 : vector<8xf32> to vector<8x1xf32>
    %cst_240 = arith.constant 2.000000e-02 : f32
    %461 = vector.broadcast %cst_240 : f32 to vector<8x1xf32>
    %462 = arith.mulf %458, %461 : vector<8x1xf32>
    %cst_241 = arith.constant 2.000000e-02 : f32
    %463 = vector.broadcast %cst_241 : f32 to vector<8x1xf32>
    %464 = arith.mulf %460, %463 : vector<8x1xf32>
    %465 = arith.mulf %462, %462 : vector<8x1xf32>
    %466 = arith.subf %464, %465 : vector<8x1xf32>
    %c376 = arith.constant 376 : index
    %c0_242 = arith.constant 0 : index
    %467 = vector.load %arg1[%c376, %c0_242] : memref<408x49xf32, #tpu.memory_space<vmem>>, vector<8x49xf32>
    %c384 = arith.constant 384 : index
    %c0_243 = arith.constant 0 : index
    %468 = vector.load %arg1[%c384, %c0_243] : memref<408x49xf32, #tpu.memory_space<vmem>>, vector<8x49xf32>
    %cst_244 = arith.constant 9.99999974E-6 : f32
    %469 = vector.broadcast %cst_244 : f32 to vector<8x1xf32>
    %470 = arith.addf %466, %469 : vector<8x1xf32>
    %471 = math.rsqrt %470 : vector<8x1xf32>
    %472 = vector.broadcast %471 : vector<8x1xf32> to vector<8x49xf32>
    %473 = arith.mulf %472, %467 : vector<8x49xf32>
    %474 = vector.broadcast %462 : vector<8x1xf32> to vector<8x49xf32>
    %475 = arith.mulf %474, %473 : vector<8x49xf32>
    %476 = arith.subf %468, %475 : vector<8x49xf32>
    %c392 = arith.constant 392 : index
    %c0_245 = arith.constant 0 : index
    %477 = vector.load %arg1[%c392, %c0_245] : memref<408x49xf32, #tpu.memory_space<vmem>>, vector<8x49xf32>
    %c400 = arith.constant 400 : index
    %c0_246 = arith.constant 0 : index
    %478 = vector.load %arg1[%c400, %c0_246] : memref<408x49xf32, #tpu.memory_space<vmem>>, vector<1x1xf32>
    %479 = arith.mulf %448, %473 : vector<8x49xf32>
    %480 = arith.addf %479, %476 : vector<8x49xf32>
    %cst_247 = arith.constant 0.000000e+00 : f32
    %481 = vector.broadcast %cst_247 : f32 to vector<8x49xf32>
    %482 = arith.cmpf oge, %480, %481 : vector<8x49xf32>
    %cst_248 = arith.constant 2.000000e-01 : f32
    %483 = vector.broadcast %cst_248 : f32 to vector<8x49xf32>
    %484 = arith.mulf %483, %480 : vector<8x49xf32>
    %485 = arith.select %482, %480, %484 : vector<8x49xi1>, vector<8x49xf32>
    %486 = arith.mulf %485, %477 : vector<8x49xf32>
    %cst_249 = arith.constant dense<0.000000e+00> : vector<8xf32>
    %487 = vector.multi_reduction <add>, %486, %cst_249 [1] : vector<8x49xf32> to vector<8xf32>
    %488 = vector.shape_cast %487 : vector<8xf32> to vector<8x1xf32>
    %cst_250 = arith.constant dense<0.000000e+00> : vector<1xf32>
    %489 = vector.multi_reduction <add>, %488, %cst_250 [0] : vector<8x1xf32> to vector<1xf32>
    %490 = vector.shape_cast %489 : vector<1xf32> to vector<1x1xf32>
    %491 = arith.addf %490, %478 : vector<1x1xf32>
    %cst_251 = arith.constant 0.000000e+00 : f32
    %492 = vector.broadcast %cst_251 : f32 to vector<1x1xf32>
    %493 = arith.subf %492, %491 : vector<1x1xf32>
    %494 = math.exp %493 : vector<1x1xf32>
    %cst_252 = arith.constant 1.000000e+00 : f32
    %495 = vector.broadcast %cst_252 : f32 to vector<1x1xf32>
    %496 = arith.addf %495, %494 : vector<1x1xf32>
    %497 = tpu.reciprocal %496 {approx = true} : vector<1x1xf32> -> vector<1x1xf32>
    %c0_253 = arith.constant 0 : index
    %c0_254 = arith.constant 0 : index
    %498 = vector.load %arg2[%c0_253, %c0_254] : memref<2x1xf32, #tpu.memory_space<vmem>>, vector<1x1xf32>
    tpu.vector_store %arg2[%c0_253, %c0_254], %497 {strides = array<i32>} : memref<2x1xf32, #tpu.memory_space<vmem>>, vector<1x1xf32>,
    %499 = arith.mulf %452, %473 : vector<8x49xf32>
    %500 = arith.addf %499, %476 : vector<8x49xf32>
    %cst_255 = arith.constant 0.000000e+00 : f32
    %501 = vector.broadcast %cst_255 : f32 to vector<8x49xf32>
    %502 = arith.cmpf oge, %500, %501 : vector<8x49xf32>
    %cst_256 = arith.constant 2.000000e-01 : f32
    %503 = vector.broadcast %cst_256 : f32 to vector<8x49xf32>
    %504 = arith.mulf %503, %500 : vector<8x49xf32>
    %505 = arith.select %502, %500, %504 : vector<8x49xi1>, vector<8x49xf32>
    %506 = arith.mulf %505, %477 : vector<8x49xf32>
    %cst_257 = arith.constant dense<0.000000e+00> : vector<8xf32>
    %507 = vector.multi_reduction <add>, %506, %cst_257 [1] : vector<8x49xf32> to vector<8xf32>
    %508 = vector.shape_cast %507 : vector<8xf32> to vector<8x1xf32>
    %cst_258 = arith.constant dense<0.000000e+00> : vector<1xf32>
    %509 = vector.multi_reduction <add>, %508, %cst_258 [0] : vector<8x1xf32> to vector<1xf32>
    %510 = vector.shape_cast %509 : vector<1xf32> to vector<1x1xf32>
    %511 = arith.addf %510, %478 : vector<1x1xf32>
    %cst_259 = arith.constant 0.000000e+00 : f32
    %512 = vector.broadcast %cst_259 : f32 to vector<1x1xf32>
    %513 = arith.subf %512, %511 : vector<1x1xf32>
    %514 = math.exp %513 : vector<1x1xf32>
    %cst_260 = arith.constant 1.000000e+00 : f32
    %515 = vector.broadcast %cst_260 : f32 to vector<1x1xf32>
    %516 = arith.addf %515, %514 : vector<1x1xf32>
    %517 = tpu.reciprocal %516 {approx = true} : vector<1x1xf32> -> vector<1x1xf32>
    %c1_261 = arith.constant 1 : index
    %c0_262 = arith.constant 0 : index
    %518 = vector.load %arg2[%c1_261, %c0_262] : memref<2x1xf32, #tpu.memory_space<vmem>>, vector<1x1xf32>
    tpu.vector_store %arg2[%c1_261, %c0_262], %517 {strides = array<i32>} : memref<2x1xf32, #tpu.memory_space<vmem>>, vector<1x1xf32>,
    return
  }
}

</mosaic_0001>

<llo_original>
// kernel: tpu_custom_call.1
$region0: #{tpu_custom_call.1}
  #allocation0 [shape = 'u32[]', space=smem, size = 0x4, offset = 0x4, fixed_abs, tag = 'smem constant byte address 0x4 - core index']
  #allocation1 [shape = 'u32[144,128]{1,0:T(1,128)}', space=vmem, size = 0x12000, scoped, tag = 'internal scratch']
  #allocation2 [shape = 'f32[8,65]{1,0:T(8,128)}', space=vmem, size = 0x1000, scoped, tag = 'scratch operand']
  %s0 = inlined_call_operand.vmem [shape: f32[2,65], index: 0, kind: input, shape index: {}]
  %s1 = inlined_call_operand.vmem [shape: f32[408,49], index: 1, kind: input, shape index: {}]
  %s2 = inlined_call_operand.vmem [shape: f32[2,1], index: 2, kind: output, shape index: {}]
  %s3 = sld [smem:[#allocation0]]
  $region18: #{tpu_custom_call.1} parent=0
    _
  %s5 = ssub.s32 1, %s3
  %s6 = scalar_select 0, %s5, %s3
  // Predicated region
  $region2: #{tpu_custom_call.1} parent=0 // pred_check
    _
  $region3: #{tpu_custom_call.1} parent=0 // pred_check_branch
    %8 = sbr.rel (0) target = $region5
  $region4: #{tpu_custom_call.1} parent=0 // pred_region
    _
  $region5: #{tpu_custom_call.1} parent=0 // pred_fallthru
    _
  // Predicated region
  $region6: #{tpu_custom_call.1} parent=0 // pred_check
    _
  $region7: #{tpu_custom_call.1} parent=0 // pred_check_branch
    %10 = sbr.rel (0) target = $region9
  $region8: #{tpu_custom_call.1} parent=0 // pred_region
    _
  $region9: #{tpu_custom_call.1} parent=0 // pred_fallthru
    _
  %v11 = vld [vmem:[%s1] sm:$0xf]
  %v12 = vld [vmem:[%s0] sm:$0x1]
  %v13 = vlaneseq
  %v14 = vshrl.u32 %v13, 7
  %v15 = vsub.s32 0, %v14
  %v16 = vrot.slane %v12, %v15
  %v17 = vmul.f32 %v16, %v11
  %v18 = vadd.f32 %v17, 0.0
  %v19 = vld [vmem:[%s0 + $0x1] sm:$0x1]
  %v20 = vlaneseq
  %v21 = vshrl.u32 %v20, 7
  %v22 = vsub.s32 0, %v21
  %v23 = vrot.slane %v19, %v22
  %v24 = vmul.f32 %v23, %v11
  %v25 = vadd.f32 %v24, 0.0
  %v26 = vld [vmem:[%s1 + $0x8] sm:$0xf]
  %28 = vrot.lane.b32.xlu0 %v26, 1
  %v29 = vpop.permute.xlu0 %28
  %v31 = vmul.f32 %v16, %v29
  %33 = vrot.lane.b32.xlu0 %v31, 127
  %v34 = vpop.permute.xlu0 %33
  %v36 = vadd.f32 %v18, %v34
  %v37 = vmul.f32 %v23, %v29
  %39 = vrot.lane.b32.xlu0 %v37, 127
  %v40 = vpop.permute.xlu0 %39
  %v42 = vadd.f32 %v25, %v40
  %v43 = vld [vmem:[%s1 + $0x10] sm:$0xf]
  %45 = vrot.lane.b32.xlu0 %v43, 2
  %v46 = vpop.permute.xlu0 %45
  %v48 = vmul.f32 %v16, %v46
  %50 = vrot.lane.b32.xlu0 %v48, 126
  %v51 = vpop.permute.xlu0 %50
  %v53 = vadd.f32 %v36, %v51
  %v54 = vmul.f32 %v23, %v46
  %56 = vrot.lane.b32.xlu0 %v54, 126
  %v57 = vpop.permute.xlu0 %56
  %v59 = vadd.f32 %v42, %v57
  %v60 = vld [vmem:[%s1 + $0x18] sm:$0xf]
  %62 = vrot.lane.b32.xlu0 %v60, 7
  %v63 = vpop.permute.xlu0 %62
  %v65 = vmul.f32 %v16, %v63
  %67 = vrot.lane.b32.xlu0 %v65, 121
  %v68 = vpop.permute.xlu0 %67
  %v70 = vadd.f32 %v53, %v68
  %v71 = vmul.f32 %v23, %v63
  %73 = vrot.lane.b32.xlu0 %v71, 121
  %v74 = vpop.permute.xlu0 %73
  %v76 = vadd.f32 %v59, %v74
  %v77 = vld [vmem:[%s1 + $0x20] sm:$0xf]
  %79 = vrot.lane.b32.xlu0 %v77, 8
  %v80 = vpop.permute.xlu0 %79
  %v82 = vmul.f32 %v16, %v80
  %84 = vrot.lane.b32.xlu0 %v82, 120
  %v85 = vpop.permute.xlu0 %84
  %v87 = vadd.f32 %v70, %v85
  %v88 = vmul.f32 %v23, %v80
  %90 = vrot.lane.b32.xlu0 %v88, 120
  %v91 = vpop.permute.xlu0 %90
  %v93 = vadd.f32 %v76, %v91
  %v94 = vld [vmem:[%s1 + $0x28] sm:$0xf]
  %96 = vrot.lane.b32.xlu0 %v94, 9
  %v97 = vpop.permute.xlu0 %96
  %v99 = vmul.f32 %v16, %v97
  %101 = vrot.lane.b32.xlu0 %v99, 119
  %v102 = vpop.permute.xlu0 %101
  %v104 = vadd.f32 %v87, %v102
  %v105 = vmul.f32 %v23, %v97
  %107 = vrot.lane.b32.xlu0 %v105, 119
  %v108 = vpop.permute.xlu0 %107
  %v110 = vadd.f32 %v93, %v108
  %v111 = vld [vmem:[%s1 + $0x30] sm:$0xf]
  %113 = vrot.lane.b32.xlu0 %v111, 14
  %v114 = vpop.permute.xlu0 %113
  %v116 = vmul.f32 %v16, %v114
  %118 = vrot.lane.b32.xlu0 %v116, 114
  %v119 = vpop.permute.xlu0 %118
  %v121 = vadd.f32 %v104, %v119
  %v122 = vmul.f32 %v23, %v114
  %124 = vrot.lane.b32.xlu0 %v122, 114
  %v125 = vpop.permute.xlu0 %124
  %v127 = vadd.f32 %v110, %v125
  %v128 = vld [vmem:[%s1 + $0x38] sm:$0xf]
  %130 = vrot.lane.b32.xlu0 %v128, 15
  %v131 = vpop.permute.xlu0 %130
  %v133 = vmul.f32 %v16, %v131
  %135 = vrot.lane.b32.xlu0 %v133, 113
  %v136 = vpop.permute.xlu0 %135
  %v138 = vadd.f32 %v121, %v136
  %v139 = vmul.f32 %v23, %v131
  %141 = vrot.lane.b32.xlu0 %v139, 113
  %v142 = vpop.permute.xlu0 %141
  %v144 = vadd.f32 %v127, %v142
  %v145 = vld [vmem:[%s1 + $0x40] sm:$0xf]
  %147 = vrot.lane.b32.xlu0 %v145, 16
  %v148 = vpop.permute.xlu0 %147
  %v150 = vmul.f32 %v16, %v148
  %152 = vrot.lane.b32.xlu0 %v150, 112
  %v153 = vpop.permute.xlu0 %152
  %v155 = vadd.f32 %v138, %v153
  %v156 = vmul.f32 %v23, %v148
  %158 = vrot.lane.b32.xlu0 %v156, 112
  %v159 = vpop.permute.xlu0 %158
  %v161 = vadd.f32 %v144, %v159
  %v162 = vmul.f32 %v155, %v155
  %v163 = vadd.f32 %v155, %v161
  %v164 = vmul.f32 %v161, %v161
  %v165 = vadd.f32 %v162, %v164
  %vm166 = vcmask 396288
  %v167 = vsel %vm166, %v163, 0.0
  %168 = vadd.xlane.f32.xlu0 %v167
  %v169 = vpop.xlane.xlu0 %168
  %v170 = vsel %vm166, %v165, 0.0
  %171 = vadd.xlane.f32.xlu0 %v170
  %v172 = vpop.xlane.xlu0 %171
  %v173 = vmul.f32 %v169, 0.02
  %v174 = vmul.f32 %v172, 0.02
  %v175 = vmul.f32 %v173, %v173
  %v176 = vsub.f32 %v174, %v175
  %v177 = vld [vmem:[%s1 + $0x168] sm:$0xf]
  %v178 = vld [vmem:[%s1 + $0x170] sm:$0xf]
  %v179 = vadd.f32 %v176, 1e-05
  %v180 = vrsqrt.pop %v179
  %v181 = vmul.f32 %v180, %v177
  %v182 = vmul.f32 %v173, %v181
  %v183 = vsub.f32 %v178, %v182
  %vm184 = vcmask 64512
  %185 = vst.msk [vmem:[#allocation2] sm:$0xff] %vm184, 0.0
  %vm186 = vcmask 531912
  %187 = vst.msk [vmem:[#allocation2] sm:$0xff] %vm186, 0.0
  %v188 = vmul.f32 %v155, %v181
  %v189 = vadd.f32 %v188, %v183
  %vm190 = vcmp.ge.f32.partialorder %v189, 0.0
  %v191 = vmul.f32 %v189, 0.2
  %v192 = vsel %vm190, %v189, %v191
  %194 = vrot.lane.b32.xlu0 %v192, 8
  %v195 = vpop.permute.xlu0 %194
  %vm197 = vcmask 461888
  %198 = vst.msk [vmem:[#allocation2] sm:$0xf] %vm197, %v195
  %v199 = vmul.f32 %v161, %v181
  %v200 = vadd.f32 %v199, %v183
  %vm201 = vcmp.ge.f32.partialorder %v200, 0.0
  %v202 = vmul.f32 %v200, 0.2
  %v203 = vsel %vm201, %v200, %v202
  %205 = vrot.lane.b32.xlu0 %v203, 8
  %v206 = vpop.permute.xlu0 %205
  %208 = vst.msk [vmem:[#allocation2 + $0x4] sm:$0xf] %vm197, %v206
  %v209 = vld [vmem:[%s1 + $0x48] sm:$0xff]
  %v210 = vld [vmem:[#allocation2] sm:$0x1]
  %v211 = vlaneseq
  %v212 = vshrl.u32 %v211, 7
  %v213 = vsub.s32 0, %v212
  %v214 = vrot.slane %v210, %v213
  %v215 = vmul.f32 %v214, %v209
  %v216 = vadd.f32 %v215, 0.0
  %v217 = vld [vmem:[#allocation2 + $0x4] sm:$0x1]
  %v218 = vlaneseq
  %v219 = vshrl.u32 %v218, 7
  %v220 = vsub.s32 0, %v219
  %v221 = vrot.slane %v217, %v220
  %v222 = vmul.f32 %v221, %v209
  %v223 = vadd.f32 %v222, 0.0
  %v224 = vld [vmem:[%s1 + $0x50] sm:$0xff]
  %226 = vrot.lane.b32.xlu0 %v224, 1
  %v227 = vpop.permute.xlu0 %226
  %v229 = vmul.f32 %v214, %v227
  %231 = vrot.lane.b32.xlu0 %v229, 127
  %v232 = vpop.permute.xlu0 %231
  %v234 = vadd.f32 %v216, %v232
  %v235 = vmul.f32 %v221, %v227
  %237 = vrot.lane.b32.xlu0 %v235, 127
  %v238 = vpop.permute.xlu0 %237
  %v240 = vadd.f32 %v223, %v238
  %v241 = vld [vmem:[%s1 + $0x58] sm:$0xff]
  %243 = vrot.lane.b32.xlu0 %v241, 2
  %v244 = vpop.permute.xlu0 %243
  %v246 = vmul.f32 %v214, %v244
  %248 = vrot.lane.b32.xlu0 %v246, 126
  %v249 = vpop.permute.xlu0 %248
  %v251 = vadd.f32 %v234, %v249
  %v252 = vmul.f32 %v221, %v244
  %254 = vrot.lane.b32.xlu0 %v252, 126
  %v255 = vpop.permute.xlu0 %254
  %v257 = vadd.f32 %v240, %v255
  %v258 = vld [vmem:[%s1 + $0x60] sm:$0xff]
  %260 = vrot.lane.b32.xlu0 %v258, 7
  %v261 = vpop.permute.xlu0 %260
  %v263 = vmul.f32 %v214, %v261
  %265 = vrot.lane.b32.xlu0 %v263, 121
  %v266 = vpop.permute.xlu0 %265
  %v268 = vadd.f32 %v251, %v266
  %v269 = vmul.f32 %v221, %v261
  %271 = vrot.lane.b32.xlu0 %v269, 121
  %v272 = vpop.permute.xlu0 %271
  %v274 = vadd.f32 %v257, %v272
  %v275 = vld [vmem:[%s1 + $0x68] sm:$0xff]
  %277 = vrot.lane.b32.xlu0 %v275, 8
  %v278 = vpop.permute.xlu0 %277
  %v280 = vmul.f32 %v214, %v278
  %282 = vrot.lane.b32.xlu0 %v280, 120
  %v283 = vpop.permute.xlu0 %282
  %v285 = vadd.f32 %v268, %v283
  %v286 = vmul.f32 %v221, %v278
  %288 = vrot.lane.b32.xlu0 %v286, 120
  %v289 = vpop.permute.xlu0 %288
  %v291 = vadd.f32 %v274, %v289
  %v292 = vld [vmem:[%s1 + $0x70] sm:$0xff]
  %294 = vrot.lane.b32.xlu0 %v292, 9
  %v295 = vpop.permute.xlu0 %294
  %v297 = vmul.f32 %v214, %v295
  %299 = vrot.lane.b32.xlu0 %v297, 119
  %v300 = vpop.permute.xlu0 %299
  %v302 = vadd.f32 %v285, %v300
  %v303 = vmul.f32 %v221, %v295
  %305 = vrot.lane.b32.xlu0 %v303, 119
  %v306 = vpop.permute.xlu0 %305
  %v308 = vadd.f32 %v291, %v306
  %v309 = vld [vmem:[%s1 + $0x78] sm:$0xff]
  %311 = vrot.lane.b32.xlu0 %v309, 14
  %v312 = vpop.permute.xlu0 %311
  %v314 = vmul.f32 %v214, %v312
  %316 = vrot.lane.b32.xlu0 %v314, 114
  %v317 = vpop.permute.xlu0 %316
  %v319 = vadd.f32 %v302, %v317
  %v320 = vmul.f32 %v221, %v312
  %322 = vrot.lane.b32.xlu0 %v320, 114
  %v323 = vpop.permute.xlu0 %322
  %v325 = vadd.f32 %v308, %v323
  %v326 = vld [vmem:[%s1 + $0x80] sm:$0xff]
  %328 = vrot.lane.b32.xlu0 %v326, 15
  %v329 = vpop.permute.xlu0 %328
  %v331 = vmul.f32 %v214, %v329
  %333 = vrot.lane.b32.xlu0 %v331, 113
  %v334 = vpop.permute.xlu0 %333
  %v336 = vadd.f32 %v319, %v334
  %v337 = vmul.f32 %v221, %v329
  %339 = vrot.lane.b32.xlu0 %v337, 113
  %v340 = vpop.permute.xlu0 %339
  %v342 = vadd.f32 %v325, %v340
  %v343 = vld [vmem:[%s1 + $0x88] sm:$0xff]
  %345 = vrot.lane.b32.xlu0 %v343, 16
  %v346 = vpop.permute.xlu0 %345
  %v348 = vmul.f32 %v214, %v346
  %350 = vrot.lane.b32.xlu0 %v348, 112
  %v351 = vpop.permute.xlu0 %350
  %v353 = vadd.f32 %v336, %v351
  %v354 = vmul.f32 %v221, %v346
  %356 = vrot.lane.b32.xlu0 %v354, 112
  %v357 = vpop.permute.xlu0 %356
  %v359 = vadd.f32 %v342, %v357
  %v360 = vld [vmem:[%s1 + $0x90] sm:$0xff]
  %v361 = vld [vmem:[#allocation2 + $0x1] sm:$0x1]
  %v362 = vlaneseq
  %v363 = vshrl.u32 %v362, 7
  %v364 = vsub.s32 0, %v363
  %v365 = vrot.slane %v361, %v364
  %v366 = vmul.f32 %v365, %v360
  %v367 = vadd.f32 %v353, %v366
  %v368 = vld [vmem:[#allocation2 + $0x5] sm:$0x1]
  %v369 = vlaneseq
  %v370 = vshrl.u32 %v369, 7
  %v371 = vsub.s32 0, %v370
  %v372 = vrot.slane %v368, %v371
  %v373 = vmul.f32 %v372, %v360
  %v374 = vadd.f32 %v359, %v373
  %v375 = vld [vmem:[%s1 + $0x98] sm:$0xff]
  %377 = vrot.lane.b32.xlu0 %v375, 1
  %v378 = vpop.permute.xlu0 %377
  %v380 = vmul.f32 %v365, %v378
  %382 = vrot.lane.b32.xlu0 %v380, 127
  %v383 = vpop.permute.xlu0 %382
  %v385 = vadd.f32 %v367, %v383
  %v386 = vmul.f32 %v372, %v378
  %388 = vrot.lane.b32.xlu0 %v386, 127
  %v389 = vpop.permute.xlu0 %388
  %v391 = vadd.f32 %v374, %v389
  %v392 = vld [vmem:[%s1 + $0xa0] sm:$0xff]
  %394 = vrot.lane.b32.xlu0 %v392, 2
  %v395 = vpop.permute.xlu0 %394
  %v397 = vmul.f32 %v365, %v395
  %399 = vrot.lane.b32.xlu0 %v397, 126
  %v400 = vpop.permute.xlu0 %399
  %v402 = vadd.f32 %v385, %v400
  %v403 = vmul.f32 %v372, %v395
  %405 = vrot.lane.b32.xlu0 %v403, 126
  %v406 = vpop.permute.xlu0 %405
  %v408 = vadd.f32 %v391, %v406
  %v409 = vld [vmem:[%s1 + $0xa8] sm:$0xff]
  %411 = vrot.lane.b32.xlu0 %v409, 7
  %v412 = vpop.permute.xlu0 %411
  %v414 = vmul.f32 %v365, %v412
  %416 = vrot.lane.b32.xlu0 %v414, 121
  %v417 = vpop.permute.xlu0 %416
  %v419 = vadd.f32 %v402, %v417
  %v420 = vmul.f32 %v372, %v412
  %422 = vrot.lane.b32.xlu0 %v420, 121
  %v423 = vpop.permute.xlu0 %422
  %v425 = vadd.f32 %v408, %v423
  %v426 = vld [vmem:[%s1 + $0xb0] sm:$0xff]
  %428 = vrot.lane.b32.xlu0 %v426, 8
  %v429 = vpop.permute.xlu0 %428
  %v431 = vmul.f32 %v365, %v429
  %433 = vrot.lane.b32.xlu0 %v431, 120
  %v434 = vpop.permute.xlu0 %433
  %v436 = vadd.f32 %v419, %v434
  %v437 = vmul.f32 %v372, %v429
  %439 = vrot.lane.b32.xlu0 %v437, 120
  %v440 = vpop.permute.xlu0 %439
  %v442 = vadd.f32 %v425, %v440
  %v443 = vld [vmem:[%s1 + $0xb8] sm:$0xff]
  %445 = vrot.lane.b32.xlu0 %v443, 9
  %v446 = vpop.permute.xlu0 %445
  %v448 = vmul.f32 %v365, %v446
  %450 = vrot.lane.b32.xlu0 %v448, 119
  %v451 = vpop.permute.xlu0 %450
  %v453 = vadd.f32 %v436, %v451
  %v454 = vmul.f32 %v372, %v446
  %456 = vrot.lane.b32.xlu0 %v454, 119
  %v457 = vpop.permute.xlu0 %456
  %v459 = vadd.f32 %v442, %v457
  %v460 = vld [vmem:[%s1 + $0xc0] sm:$0xff]
  %462 = vrot.lane.b32.xlu0 %v460, 14
  %v463 = vpop.permute.xlu0 %462
  %v465 = vmul.f32 %v365, %v463
  %467 = vrot.lane.b32.xlu0 %v465, 114
  %v468 = vpop.permute.xlu0 %467
  %v470 = vadd.f32 %v453, %v468
  %v471 = vmul.f32 %v372, %v463
  %473 = vrot.lane.b32.xlu0 %v471, 114
  %v474 = vpop.permute.xlu0 %473
  %v476 = vadd.f32 %v459, %v474
  %v477 = vld [vmem:[%s1 + $0xc8] sm:$0xff]
  %479 = vrot.lane.b32.xlu0 %v477, 15
  %v480 = vpop.permute.xlu0 %479
  %v482 = vmul.f32 %v365, %v480
  %484 = vrot.lane.b32.xlu0 %v482, 113
  %v485 = vpop.permute.xlu0 %484
  %v487 = vadd.f32 %v470, %v485
  %v488 = vmul.f32 %v372, %v480
  %490 = vrot.lane.b32.xlu0 %v488, 113
  %v491 = vpop.permute.xlu0 %490
  %v493 = vadd.f32 %v476, %v491
  %v494 = vld [vmem:[%s1 + $0xd0] sm:$0xff]
  %496 = vrot.lane.b32.xlu0 %v494, 16
  %v497 = vpop.permute.xlu0 %496
  %v499 = vmul.f32 %v365, %v497
  %501 = vrot.lane.b32.xlu0 %v499, 112
  %v502 = vpop.permute.xlu0 %501
  %v504 = vadd.f32 %v487, %v502
  %v505 = vmul.f32 %v372, %v497
  %507 = vrot.lane.b32.xlu0 %v505, 112
  %v508 = vpop.permute.xlu0 %507
  %v510 = vadd.f32 %v493, %v508
  %v511 = vld [vmem:[%s1 + $0xd8] sm:$0xff]
  %v512 = vld [vmem:[#allocation2 + $0x2] sm:$0x1]
  %v513 = vlaneseq
  %v514 = vshrl.u32 %v513, 7
  %v515 = vsub.s32 0, %v514
  %v516 = vrot.slane %v512, %v515
  %v517 = vmul.f32 %v516, %v511
  %v518 = vadd.f32 %v504, %v517
  %v519 = vld [vmem:[#allocation2 + $0x6] sm:$0x1]
  %v520 = vlaneseq
  %v521 = vshrl.u32 %v520, 7
  %v522 = vsub.s32 0, %v521
  %v523 = vrot.slane %v519, %v522
  %v524 = vmul.f32 %v523, %v511
  %v525 = vadd.f32 %v510, %v524
  %v526 = vld [vmem:[%s1 + $0xe0] sm:$0xff]
  %528 = vrot.lane.b32.xlu0 %v526, 1
  %v529 = vpop.permute.xlu0 %528
  %v531 = vmul.f32 %v516, %v529
  %533 = vrot.lane.b32.xlu0 %v531, 127
  %v534 = vpop.permute.xlu0 %533
  %v536 = vadd.f32 %v518, %v534
  %v537 = vmul.f32 %v523, %v529
  %539 = vrot.lane.b32.xlu0 %v537, 127
  %v540 = vpop.permute.xlu0 %539
  %v542 = vadd.f32 %v525, %v540
  %v543 = vld [vmem:[%s1 + $0xe8] sm:$0xff]
  %545 = vrot.lane.b32.xlu0 %v543, 2
  %v546 = vpop.permute.xlu0 %545
  %v548 = vmul.f32 %v516, %v546
  %550 = vrot.lane.b32.xlu0 %v548, 126
  %v551 = vpop.permute.xlu0 %550
  %v553 = vadd.f32 %v536, %v551
  %v554 = vmul.f32 %v523, %v546
  %556 = vrot.lane.b32.xlu0 %v554, 126
  %v557 = vpop.permute.xlu0 %556
  %v559 = vadd.f32 %v542, %v557
  %v560 = vld [vmem:[%s1 + $0xf0] sm:$0xff]
  %562 = vrot.lane.b32.xlu0 %v560, 7
  %v563 = vpop.permute.xlu0 %562
  %v565 = vmul.f32 %v516, %v563
  %567 = vrot.lane.b32.xlu0 %v565, 121
  %v568 = vpop.permute.xlu0 %567
  %v570 = vadd.f32 %v553, %v568
  %v571 = vmul.f32 %v523, %v563
  %573 = vrot.lane.b32.xlu0 %v571, 121
  %v574 = vpop.permute.xlu0 %573
  %v576 = vadd.f32 %v559, %v574
  %v577 = vld [vmem:[%s1 + $0xf8] sm:$0xff]
  %579 = vrot.lane.b32.xlu0 %v577, 8
  %v580 = vpop.permute.xlu0 %579
  %v582 = vmul.f32 %v516, %v580
  %584 = vrot.lane.b32.xlu0 %v582, 120
  %v585 = vpop.permute.xlu0 %584
  %v587 = vadd.f32 %v570, %v585
  %v588 = vmul.f32 %v523, %v580
  %590 = vrot.lane.b32.xlu0 %v588, 120
  %v591 = vpop.permute.xlu0 %590
  %v593 = vadd.f32 %v576, %v591
  %v594 = vld [vmem:[%s1 + $0x100] sm:$0xff]
  %596 = vrot.lane.b32.xlu0 %v594, 9
  %v597 = vpop.permute.xlu0 %596
  %v599 = vmul.f32 %v516, %v597
  %601 = vrot.lane.b32.xlu0 %v599, 119
  %v602 = vpop.permute.xlu0 %601
  %v604 = vadd.f32 %v587, %v602
  %v605 = vmul.f32 %v523, %v597
  %607 = vrot.lane.b32.xlu0 %v605, 119
  %v608 = vpop.permute.xlu0 %607
  %v610 = vadd.f32 %v593, %v608
  %v611 = vld [vmem:[%s1 + $0x108] sm:$0xff]
  %613 = vrot.lane.b32.xlu0 %v611, 14
  %v614 = vpop.permute.xlu0 %613
  %v616 = vmul.f32 %v516, %v614
  %618 = vrot.lane.b32.xlu0 %v616, 114
  %v619 = vpop.permute.xlu0 %618
  %v621 = vadd.f32 %v604, %v619
  %v622 = vmul.f32 %v523, %v614
  %624 = vrot.lane.b32.xlu0 %v622, 114
  %v625 = vpop.permute.xlu0 %624
  %v627 = vadd.f32 %v610, %v625
  %v628 = vld [vmem:[%s1 + $0x110] sm:$0xff]
  %630 = vrot.lane.b32.xlu0 %v628, 15
  %v631 = vpop.permute.xlu0 %630
  %v633 = vmul.f32 %v516, %v631
  %635 = vrot.lane.b32.xlu0 %v633, 113
  %v636 = vpop.permute.xlu0 %635
  %v638 = vadd.f32 %v621, %v636
  %v639 = vmul.f32 %v523, %v631
  %641 = vrot.lane.b32.xlu0 %v639, 113
  %v642 = vpop.permute.xlu0 %641
  %v644 = vadd.f32 %v627, %v642
  %v645 = vld [vmem:[%s1 + $0x118] sm:$0xff]
  %647 = vrot.lane.b32.xlu0 %v645, 16
  %v648 = vpop.permute.xlu0 %647
  %v650 = vmul.f32 %v516, %v648
  %652 = vrot.lane.b32.xlu0 %v650, 112
  %v653 = vpop.permute.xlu0 %652
  %v655 = vadd.f32 %v638, %v653
  %v656 = vmul.f32 %v523, %v648
  %658 = vrot.lane.b32.xlu0 %v656, 112
  %v659 = vpop.permute.xlu0 %658
  %v661 = vadd.f32 %v644, %v659
  %v662 = vld [vmem:[%s1 + $0x120] sm:$0xff]
  %v663 = vld [vmem:[#allocation2 + $0x3] sm:$0x1]
  %v664 = vlaneseq
  %v665 = vshrl.u32 %v664, 7
  %v666 = vsub.s32 0, %v665
  %v667 = vrot.slane %v663, %v666
  %v668 = vmul.f32 %v667, %v662
  %v669 = vadd.f32 %v655, %v668
  %v670 = vld [vmem:[#allocation2 + $0x7] sm:$0x1]
  %v671 = vlaneseq
  %v672 = vshrl.u32 %v671, 7
  %v673 = vsub.s32 0, %v672
  %v674 = vrot.slane %v670, %v673
  %v675 = vmul.f32 %v674, %v662
  %v676 = vadd.f32 %v661, %v675
  %v677 = vld [vmem:[%s1 + $0x128] sm:$0xff]
  %679 = vrot.lane.b32.xlu0 %v677, 1
  %v680 = vpop.permute.xlu0 %679
  %v682 = vmul.f32 %v667, %v680
  %684 = vrot.lane.b32.xlu0 %v682, 127
  %v685 = vpop.permute.xlu0 %684
  %v687 = vadd.f32 %v669, %v685
  %v688 = vmul.f32 %v674, %v680
  %690 = vrot.lane.b32.xlu0 %v688, 127
  %v691 = vpop.permute.xlu0 %690
  %v693 = vadd.f32 %v676, %v691
  %v694 = vld [vmem:[%s1 + $0x130] sm:$0xff]
  %696 = vrot.lane.b32.xlu0 %v694, 2
  %v697 = vpop.permute.xlu0 %696
  %v699 = vmul.f32 %v667, %v697
  %701 = vrot.lane.b32.xlu0 %v699, 126
  %v702 = vpop.permute.xlu0 %701
  %v704 = vadd.f32 %v687, %v702
  %v705 = vmul.f32 %v674, %v697
  %707 = vrot.lane.b32.xlu0 %v705, 126
  %v708 = vpop.permute.xlu0 %707
  %v710 = vadd.f32 %v693, %v708
  %v711 = vld [vmem:[%s1 + $0x138] sm:$0xff]
  %713 = vrot.lane.b32.xlu0 %v711, 7
  %v714 = vpop.permute.xlu0 %713
  %v716 = vmul.f32 %v667, %v714
  %718 = vrot.lane.b32.xlu0 %v716, 121
  %v719 = vpop.permute.xlu0 %718
  %v721 = vadd.f32 %v704, %v719
  %v722 = vmul.f32 %v674, %v714
  %724 = vrot.lane.b32.xlu0 %v722, 121
  %v725 = vpop.permute.xlu0 %724
  %v727 = vadd.f32 %v710, %v725
  %v728 = vld [vmem:[%s1 + $0x140] sm:$0xff]
  %730 = vrot.lane.b32.xlu0 %v728, 8
  %v731 = vpop.permute.xlu0 %730
  %v733 = vmul.f32 %v667, %v731
  %735 = vrot.lane.b32.xlu0 %v733, 120
  %v736 = vpop.permute.xlu0 %735
  %v738 = vadd.f32 %v721, %v736
  %v739 = vmul.f32 %v674, %v731
  %741 = vrot.lane.b32.xlu0 %v739, 120
  %v742 = vpop.permute.xlu0 %741
  %v744 = vadd.f32 %v727, %v742
  %v745 = vld [vmem:[%s1 + $0x148] sm:$0xff]
  %747 = vrot.lane.b32.xlu0 %v745, 9
  %v748 = vpop.permute.xlu0 %747
  %v750 = vmul.f32 %v667, %v748
  %752 = vrot.lane.b32.xlu0 %v750, 119
  %v753 = vpop.permute.xlu0 %752
  %v755 = vadd.f32 %v738, %v753
  %v756 = vmul.f32 %v674, %v748
  %758 = vrot.lane.b32.xlu0 %v756, 119
  %v759 = vpop.permute.xlu0 %758
  %v761 = vadd.f32 %v744, %v759
  %v762 = vld [vmem:[%s1 + $0x150] sm:$0xff]
  %764 = vrot.lane.b32.xlu0 %v762, 14
  %v765 = vpop.permute.xlu0 %764
  %v767 = vmul.f32 %v667, %v765
  %769 = vrot.lane.b32.xlu0 %v767, 114
  %v770 = vpop.permute.xlu0 %769
  %v772 = vadd.f32 %v755, %v770
  %v773 = vmul.f32 %v674, %v765
  %775 = vrot.lane.b32.xlu0 %v773, 114
  %v776 = vpop.permute.xlu0 %775
  %v778 = vadd.f32 %v761, %v776
  %v779 = vld [vmem:[%s1 + $0x158] sm:$0xff]
  %781 = vrot.lane.b32.xlu0 %v779, 15
  %v782 = vpop.permute.xlu0 %781
  %v784 = vmul.f32 %v667, %v782
  %786 = vrot.lane.b32.xlu0 %v784, 113
  %v787 = vpop.permute.xlu0 %786
  %v789 = vadd.f32 %v772, %v787
  %v790 = vmul.f32 %v674, %v782
  %792 = vrot.lane.b32.xlu0 %v790, 113
  %v793 = vpop.permute.xlu0 %792
  %v795 = vadd.f32 %v778, %v793
  %v796 = vld [vmem:[%s1 + $0x160] sm:$0xff]
  %798 = vrot.lane.b32.xlu0 %v796, 16
  %v799 = vpop.permute.xlu0 %798
  %v801 = vmul.f32 %v667, %v799
  %803 = vrot.lane.b32.xlu0 %v801, 112
  %v804 = vpop.permute.xlu0 %803
  %v806 = vadd.f32 %v789, %v804
  %v807 = vmul.f32 %v674, %v799
  %809 = vrot.lane.b32.xlu0 %v807, 112
  %v810 = vpop.permute.xlu0 %809
  %v812 = vadd.f32 %v795, %v810
  %v813 = vmul.f32 %v806, %v806
  %v814 = vadd.f32 %v806, %v812
  %v815 = vmul.f32 %v812, %v812
  %v816 = vadd.f32 %v813, %v815
  %vm817 = vcmask 400384
  %v818 = vsel %vm817, %v814, 0.0
  %819 = vadd.xlane.f32.xlu0 %v818
  %v820 = vpop.xlane.xlu0 %819
  %v821 = vsel %vm817, %v816, 0.0
  %822 = vadd.xlane.f32.xlu0 %v821
  %v823 = vpop.xlane.xlu0 %822
  %v824 = vmul.f32 %v820, 0.02
  %v825 = vmul.f32 %v823, 0.02
  %v826 = vmul.f32 %v824, %v824
  %v827 = vsub.f32 %v825, %v826
  %v828 = vld [vmem:[%s1 + $0x178] sm:$0xff]
  %v829 = vld [vmem:[%s1 + $0x180] sm:$0xff]
  %v830 = vadd.f32 %v827, 1e-05
  %v831 = vrsqrt.pop %v830
  %v832 = vmul.f32 %v831, %v828
  %v833 = vmul.f32 %v824, %v832
  %v834 = vsub.f32 %v829, %v833
  %v835 = vld [vmem:[%s1 + $0x188] sm:$0xff]
  %v836 = vld [vmem:[%s1 + $0x190] sm:$0x1]
  %v837 = vmul.f32 %v806, %v832
  %v838 = vadd.f32 %v837, %v834
  %vm839 = vcmp.ge.f32.partialorder %v838, 0.0
  %v840 = vmul.f32 %v838, 0.2
  %v841 = vsel %vm839, %v838, %v840
  %v842 = vmul.f32 %v841, %v835
  %v843 = vsel %vm817, %v842, 0.0
  %844 = vadd.xlane.f32.xlu0 %v843
  %v845 = vpop.xlane.xlu0 %844
  %v846 = vrot.slane %v845, 4
  %v847 = vadd.f32 %v845, %v846
  %v848 = vrot.slane %v847, 2
  %v849 = vadd.f32 %v847, %v848
  %v850 = vrot.slane %v849, 1
  %v851 = vadd.f32 %v849, %v850
  %v852 = vadd.f32 %v851, %v836
  %v853 = vsub.f32 0.0, %v852
  %v854 = vmul.f32 %v853, 1.442695
  %v855 = vpow.pop %v854
  %v856 = vadd.f32 %v855, 1.0
  %v857 = vrcp.pop %v856
  %vm858 = vcmask 0
  %859 = vst.msk [vmem:[%s2] sm:$0x1] %vm858, %v857
  %v860 = vmul.f32 %v812, %v832
  %v861 = vadd.f32 %v860, %v834
  %vm862 = vcmp.ge.f32.partialorder %v861, 0.0
  %v863 = vmul.f32 %v861, 0.2
  %v864 = vsel %vm862, %v861, %v863
  %v865 = vmul.f32 %v864, %v835
  %v866 = vsel %vm817, %v865, 0.0
  %867 = vadd.xlane.f32.xlu0 %v866
  %v868 = vpop.xlane.xlu0 %867
  %v869 = vrot.slane %v868, 4
  %v870 = vadd.f32 %v868, %v869
  %v871 = vrot.slane %v870, 2
  %v872 = vadd.f32 %v870, %v871
  %v873 = vrot.slane %v872, 1
  %v874 = vadd.f32 %v872, %v873
  %v875 = vadd.f32 %v874, %v836
  %v876 = vsub.f32 0.0, %v875
  %v877 = vmul.f32 %v876, 1.442695
  %v878 = vpow.pop %v877
  %v879 = vadd.f32 %v878, 1.0
  %v880 = vrcp.pop %v879
  %881 = vst.msk [vmem:[%s2 + $0x1] sm:$0x1] %vm858, %v880
  // Predicated region
  $region10: #{tpu_custom_call.1} parent=0 // pred_check
    _
  $region11: #{tpu_custom_call.1} parent=0 // pred_check_branch
    %883 = sbr.rel (0) target = $region13
  $region12: #{tpu_custom_call.1} parent=0 // pred_region
    _
  $region13: #{tpu_custom_call.1} parent=0 // pred_fallthru
    _
  // Predicated region
  $region14: #{tpu_custom_call.1} parent=0 // pred_check
    _
  $region15: #{tpu_custom_call.1} parent=0 // pred_check_branch
    %885 = sbr.rel (0) target = $region17
  $region16: #{tpu_custom_call.1} parent=0 // pred_region
    _
  $region17: #{tpu_custom_call.1} parent=0 // pred_fallthru
    _

</llo_original>
